<compile_context>
chip_gen: v7x
topology: tpu7x:2x2x1
jax: 0.10.0
libtpu: 0.0.40
codegen_flags: <defaults>
</compile_context>

<pallas_src>
import jax
import jax.numpy as jnp
from jax.experimental import pallas as pl
from jax.experimental.pallas import tpu as pltpu


def _conv1x1_kernel(w_ref, x_ref, o_ref):
    # w_ref: (C_out, C_in), x_ref: (C_in, hw_tile), o_ref: (C_out, hw_tile)
    o_ref[...] = jnp.dot(
        w_ref[...], x_ref[...], preferred_element_type=jnp.float32
    ).astype(o_ref.dtype)


def _hw_tile(hw):
    """Pick the H*W tile size per chip generation.

    v7x has 2 TensorCores per chip: split the lane axis into >=2 tiles that are
    multiples of 128 so both cores share the (memory-bound) work.
    v5e/v6e have a single TC, where extra grid steps only add per-step pipeline
    overhead, so keep one full-width block.
    """
    try:
        kind = jax.devices()[0].device_kind.lower()
    except Exception:
        kind = ""
    if "v7" in kind:
        # 128-multiple tile; 3136 = 1664 + 1472 -> one full + one masked block.
        return min(1664, hw)
    return hw


def conv2d_1x1(x_nchw, weight_oihw):
    """Pointwise conv (kernel 1x1, stride 1, no bias).

    x_nchw:      (N, C_in, H, W)     float32
    weight_oihw: (C_out, C_in, 1, 1) float32
    returns:     (N, C_out, H, W)    float32
    """
    n, cin, h, w = x_nchw.shape
    cout = weight_oihw.shape[0]
    hw = h * w

    # Free reshapes only -- no transposes: NCHW is already channel-major.
    x_mat = x_nchw.reshape(n, cin, hw)       # (N, C_in, H*W)
    w_mat = weight_oihw.reshape(cout, cin)   # (C_out, C_in)

    thw = _hw_tile(hw)
    grid = (n, pl.cdiv(hw, thw))  # (1, 1) on v5e/v6e, (1, 2) on v7x

    cost = pl.CostEstimate(
        flops=2 * n * cout * cin * hw,
        bytes_accessed=4 * (n * cin * hw + cout * cin + n * cout * hw),
        transcendentals=0,
    )

    out = pl.pallas_call(
        _conv1x1_kernel,
        out_shape=jax.ShapeDtypeStruct((n, cout, hw), x_nchw.dtype),
        grid_spec=pl.GridSpec(
            grid=grid,
            in_specs=[
                # Weight: fetched once, identical block every step.
                pl.BlockSpec((cout, cin), lambda b, t: (0, 0)),
                # (C_in, hw_tile) slab; batch dim squeezed out of the kernel
                # view. Either thw == hw (full dim) or thw % 128 == 0, so the
                # (8,128) tiling rule is satisfied; cin/cout equal full dims.
                pl.BlockSpec((pl.Squeezed(), cin, thw), lambda b, t: (b, 0, t)),
            ],
            out_specs=pl.BlockSpec(
                (pl.Squeezed(), cout, thw), lambda b, t: (b, 0, t)
            ),
        ),
        compiler_params=pltpu.CompilerParams(
            dimension_semantics=("parallel", "parallel"),
        ),
        cost_estimate=cost,
    )(w_mat, x_mat)

    # (N, C_out, H*W) -> (N, C_out, H, W): free reshape, matches PyTorch NCHW.
    return out.reshape(n, cout, h, w)


if __name__ == "__main__":
    key = jax.random.PRNGKey(0)
    kx, kw = jax.random.split(key)

    # Shapes implied by the module's forward: x4 = randn(1, 24, 56, 56)
    x = jax.random.normal(kx, (1, 24, 56, 56), dtype=jnp.float32)
    # Conv2d(24, 58, kernel_size=1, bias=False) weight: (58, 24, 1, 1)
    bound = 1.0 / jnp.sqrt(24.0)  # mimic PyTorch's uniform fan-in scaling
    weight = jax.random.uniform(
        kw, (58, 24, 1, 1), dtype=jnp.float32, minval=-bound, maxval=bound
    )

    out = conv2d_1x1(x, weight)
    out = jax.block_until_ready(out)

    # Cross-check against a plain-JAX reference of the same 1x1 conv.
    ref = jnp.einsum("nchw,oc->nohw", x, weight.reshape(58, 24))
    assert out.shape == (1, 58, 56, 56), out.shape
    assert jnp.allclose(out, ref, atol=1e-4, rtol=1e-4)

    print("KERNEL_OK")
</pallas_src>

<mosaic_0001>
module attributes {stable_mosaic.version = 11 : i64} {
  func.func @_conv1x1_kernel(%arg0: i32, %arg1: i32, %arg2: memref<58x24xf32, #tpu.memory_space<vmem>>, %arg3: memref<1x24x3136xf32, #tpu.memory_space<vmem>>, %arg4: memref<1x58x3136xf32, #tpu.memory_space<vmem>>) attributes {dimension_semantics = [#tpu.dimension_semantics<parallel>, #tpu.dimension_semantics<parallel>], iteration_bounds = array<i64: 1, 1>, scalar_prefetch = 0 : i64, scratch_operands = 0 : i64, tpu.core_type = #tpu.core_type<tc>, window_params = [{pipeline_mode = #tpu.pipeline_mode<synchronous>, transform_indices = @transform_0, window_bounds = array<i64: 58, 24>}, {transform_indices = @transform_1, window_bounds = array<i64: 1, 24, 3136>}, {transform_indices = @transform_2, window_bounds = array<i64: 1, 58, 3136>}]} {
    %c0 = arith.constant 0 : index
    %c0_0 = arith.constant 0 : index
    %0 = vector.load %arg2[%c0, %c0_0] : memref<58x24xf32, #tpu.memory_space<vmem>>, vector<58x24xf32>
    %c0_1 = arith.constant 0 : index
    %c0_2 = arith.constant 0 : index
    %c0_3 = arith.constant 0 : index
    %1 = vector.load %arg3[%c0_1, %c0_2, %c0_3] : memref<1x24x3136xf32, #tpu.memory_space<vmem>>, vector<1x24x3136xf32>
    %2 = vector.shape_cast %1 : vector<1x24x3136xf32> to vector<24x3136xf32>
    %cst = arith.constant dense<0.000000e+00> : vector<58x3136xf32>
    %3 = tpu.matmul %0, %2, %cst {dimension_numbers = #tpu.dot_dimension_numbers<[1], [0], [0], [1], [0, 0, 1, 1], [], []>} : vector<58x24xf32>, vector<24x3136xf32>, vector<58x3136xf32> -> vector<58x3136xf32>
    %c0_4 = arith.constant 0 : index
    %c0_5 = arith.constant 0 : index
    %c0_6 = arith.constant 0 : index
    %4 = vector.load %arg4[%c0_4, %c0_5, %c0_6] : memref<1x58x3136xf32, #tpu.memory_space<vmem>>, vector<1x58x3136xf32>
    %5 = vector.shape_cast %4 : vector<1x58x3136xf32> to vector<58x3136xf32>
    %6 = vector.shape_cast %3 : vector<58x3136xf32> to vector<1x58x3136xf32>
    tpu.vector_store %arg4[%c0_4, %c0_5, %c0_6], %6 {strides = array<i32>} : memref<1x58x3136xf32, #tpu.memory_space<vmem>>, vector<1x58x3136xf32>,
    return
  }
  func.func @transform_0(%arg0: i32, %arg1: i32) -> (i32, i32) {
    %c0_i32 = arith.constant 0 : i32
    %c0_i32_0 = arith.constant 0 : i32
    %c0_i32_1 = arith.constant 0 : i32
    return %c0_i32, %c0_i32_0 : i32, i32
  }
  func.func @transform_1(%arg0: i32, %arg1: i32) -> (i32, i32, i32) {
    %c0_i32 = arith.constant 0 : i32
    %c0_i32_0 = arith.constant 0 : i32
    return %arg0, %c0_i32, %arg1 : i32, i32, i32
  }
  func.func @transform_2(%arg0: i32, %arg1: i32) -> (i32, i32, i32) {
    %c0_i32 = arith.constant 0 : i32
    %c0_i32_0 = arith.constant 0 : i32
    return %arg0, %c0_i32, %arg1 : i32, i32, i32
  }
}

</mosaic_0001>

<llo_original>
// kernel: tpu_custom_call.1
$region0: #{tpu_custom_call.1}
  #allocation0 [shape = 'u32[]', space=smem, size = 0x4, offset = 0x4, fixed_abs, tag = 'smem constant byte address 0x4 - core index']
  #allocation1 [shape = 'u32[144,128]{1,0:T(1,128)}', space=vmem, size = 0x12000, scoped, tag = 'internal scratch']
  %s0 = inlined_call_operand.vmem [shape: f32[58,24], index: 0, kind: input, shape index: {}]
  %s1 = inlined_call_operand.hbm [shape: f32[1,24,3136], index: 1, kind: input, shape index: {}]
  %s2 = inlined_call_operand.vmem [shape: f32[1,58,3136], index: 2, kind: output, shape index: {}]
  %s3 = sld [smem:[#allocation0]]
  $region22: #{tpu_custom_call.1} parent=0
    _
  %s5 = ssub.s32 1, %s3
  %s6 = scalar_select 0, %s5, %s3
  $region1: #{tpu_custom_call.1} parent=0
    #allocation2 [shape = 'u8[307200]{0}', space=vmem, size = 0x4b000, scoped, tag = 'input window, operand 1, single buffered']
    #allocation3 [shape = 's32[1]{0}', space=sflag, size = 0x4, scoped, tag = 'scoped memory for tpu_custom_call.1']
    %7 = vsyncpa [#allocation3], 0
    // Predicated region
    $region2: #{tpu_custom_call.1} parent=1 // pred_check
      _
    $region3: #{tpu_custom_call.1} parent=1 // pred_check_branch
      %9 = sbr.rel (0) target = $region5
    $region4: #{tpu_custom_call.1} parent=1 // pred_region
      _
    $region5: #{tpu_custom_call.1} parent=1 // pred_fallthru
      _
    // Predicated region
    $region6: #{tpu_custom_call.1} parent=1 // pred_check
      _
    $region7: #{tpu_custom_call.1} parent=1 // pred_check_branch
      %11 = sbr.rel (0) target = $region9
    $region8: #{tpu_custom_call.1} parent=1 // pred_region
      %s13 = ssub.s32 9600, 9600
      %14 = vsyncadd [#allocation3], %s13
      %s15 = sshll.u32 [#allocation2], 4
      %s16 = int_to_ptr.vmem [resolvable:$true] %s15
      %21 = dma.hbm_to_vmem [thread:$0]  %s1, 9600, %s16, [#allocation3], 3200, 3200, 200
    $region9: #{tpu_custom_call.1} parent=1 // pred_fallthru
      _
    // Predicated region
    $region10: #{tpu_custom_call.1} parent=1 // pred_check
      _
    $region11: #{tpu_custom_call.1} parent=1 // pred_check_branch
      %23 = sbr.rel (0) target = $region13
    $region12: #{tpu_custom_call.1} parent=1 // pred_region
      %24 = dma.done [#allocation3], 9600
    $region13: #{tpu_custom_call.1} parent=1 // pred_fallthru
      _
    %v25 = vld [vmem:[%s0] sm:$0xff]
    %v26 = vld [vmem:[%s0 + $0x8] sm:$0xff]
    %v27 = vld [vmem:[%s0 + $0x10] sm:$0xff]
    %v28 = vld [vmem:[%s0 + $0x18] sm:$0xff]
    %v29 = vld [vmem:[%s0 + $0x20] sm:$0xff]
    %v30 = vld [vmem:[%s0 + $0x28] sm:$0xff]
    %v31 = vld [vmem:[%s0 + $0x30] sm:$0xff]
    %v32 = vld [vmem:[%s0 + $0x38] sm:$0x3]
    %v33 = vld [vmem:[#allocation2] sm:$0xff]
    %v34 = vld [vmem:[#allocation2 + $0x8] sm:$0xff]
    %v35 = vld [vmem:[#allocation2 + $0x10] sm:$0xff]
    %v36 = vld [vmem:[#allocation2 + $0x18] sm:$0xff]
    %v37 = vld [vmem:[#allocation2 + $0x20] sm:$0xff]
    %v38 = vld [vmem:[#allocation2 + $0x28] sm:$0xff]
    %v39 = vld [vmem:[#allocation2 + $0x30] sm:$0xff]
    %v40 = vld [vmem:[#allocation2 + $0x38] sm:$0xff]
    %v41 = vld [vmem:[#allocation2 + $0x40] sm:$0xff]
    %v42 = vld [vmem:[#allocation2 + $0x48] sm:$0xff]
    %v43 = vld [vmem:[#allocation2 + $0x50] sm:$0xff]
    %v44 = vld [vmem:[#allocation2 + $0x58] sm:$0xff]
    %v45 = vld [vmem:[#allocation2 + $0x60] sm:$0xff]
    %v46 = vld [vmem:[#allocation2 + $0x68] sm:$0xff]
    %v47 = vld [vmem:[#allocation2 + $0x70] sm:$0xff]
    %v48 = vld [vmem:[#allocation2 + $0x78] sm:$0xff]
    %v49 = vld [vmem:[#allocation2 + $0x80] sm:$0xff]
    %v50 = vld [vmem:[#allocation2 + $0x88] sm:$0xff]
    %v51 = vld [vmem:[#allocation2 + $0x90] sm:$0xff]
    %v52 = vld [vmem:[#allocation2 + $0x98] sm:$0xff]
    %v53 = vld [vmem:[#allocation2 + $0xa0] sm:$0xff]
    %v54 = vld [vmem:[#allocation2 + $0xa8] sm:$0xff]
    %v55 = vld [vmem:[#allocation2 + $0xb0] sm:$0xff]
    %v56 = vld [vmem:[#allocation2 + $0xb8] sm:$0xff]
    %v57 = vld [vmem:[#allocation2 + $0xc0] sm:$0xff]
    %v58 = vld [vmem:[#allocation2 + $0xc8] sm:$0xff]
    %v59 = vld [vmem:[#allocation2 + $0xd0] sm:$0xff]
    %v60 = vld [vmem:[#allocation2 + $0xd8] sm:$0xff]
    %v61 = vld [vmem:[#allocation2 + $0xe0] sm:$0xff]
    %v62 = vld [vmem:[#allocation2 + $0xe8] sm:$0xff]
    %v63 = vld [vmem:[#allocation2 + $0xf0] sm:$0xff]
    %v64 = vld [vmem:[#allocation2 + $0xf8] sm:$0xff]
    %v65 = vld [vmem:[#allocation2 + $0x100] sm:$0xff]
    %v66 = vld [vmem:[#allocation2 + $0x108] sm:$0xff]
    %v67 = vld [vmem:[#allocation2 + $0x110] sm:$0xff]
    %v68 = vld [vmem:[#allocation2 + $0x118] sm:$0xff]
    %v69 = vld [vmem:[#allocation2 + $0x120] sm:$0xff]
    %v70 = vld [vmem:[#allocation2 + $0x128] sm:$0xff]
    %v71 = vld [vmem:[#allocation2 + $0x130] sm:$0xff]
    %v72 = vld [vmem:[#allocation2 + $0x138] sm:$0xff]
    %v73 = vld [vmem:[#allocation2 + $0x140] sm:$0xff]
    %v74 = vld [vmem:[#allocation2 + $0x148] sm:$0xff]
    %v75 = vld [vmem:[#allocation2 + $0x150] sm:$0xff]
    %v76 = vld [vmem:[#allocation2 + $0x158] sm:$0xff]
    %v77 = vld [vmem:[#allocation2 + $0x160] sm:$0xff]
    %v78 = vld [vmem:[#allocation2 + $0x168] sm:$0xff]
    %v79 = vld [vmem:[#allocation2 + $0x170] sm:$0xff]
    %v80 = vld [vmem:[#allocation2 + $0x178] sm:$0xff]
    %v81 = vld [vmem:[#allocation2 + $0x180] sm:$0xff]
    %v82 = vld [vmem:[#allocation2 + $0x188] sm:$0xff]
    %v83 = vld [vmem:[#allocation2 + $0x190] sm:$0xff]
    %v84 = vld [vmem:[#allocation2 + $0x198] sm:$0xff]
    %v85 = vld [vmem:[#allocation2 + $0x1a0] sm:$0xff]
    %v86 = vld [vmem:[#allocation2 + $0x1a8] sm:$0xff]
    %v87 = vld [vmem:[#allocation2 + $0x1b0] sm:$0xff]
    %v88 = vld [vmem:[#allocation2 + $0x1b8] sm:$0xff]
    %v89 = vld [vmem:[#allocation2 + $0x1c0] sm:$0xff]
    %v90 = vld [vmem:[#allocation2 + $0x1c8] sm:$0xff]
    %v91 = vld [vmem:[#allocation2 + $0x1d0] sm:$0xff]
    %v92 = vld [vmem:[#allocation2 + $0x1d8] sm:$0xff]
    %v93 = vld [vmem:[#allocation2 + $0x1e0] sm:$0xff]
    %v94 = vld [vmem:[#allocation2 + $0x1e8] sm:$0xff]
    %v95 = vld [vmem:[#allocation2 + $0x1f0] sm:$0xff]
    %v96 = vld [vmem:[#allocation2 + $0x1f8] sm:$0xff]
    %v97 = vld [vmem:[#allocation2 + $0x200] sm:$0xff]
    %v98 = vld [vmem:[#allocation2 + $0x208] sm:$0xff]
    %v99 = vld [vmem:[#allocation2 + $0x210] sm:$0xff]
    %v100 = vld [vmem:[#allocation2 + $0x218] sm:$0xff]
    %v101 = vld [vmem:[#allocation2 + $0x220] sm:$0xff]
    %v102 = vld [vmem:[#allocation2 + $0x228] sm:$0xff]
    %v103 = vld [vmem:[#allocation2 + $0x230] sm:$0xff]
    %v104 = vld [vmem:[#allocation2 + $0x238] sm:$0xff]
    %v105 = vld [vmem:[#allocation2 + $0x240] sm:$0xff]
    %v106 = vld [vmem:[#allocation2 + $0x248] sm:$0xff]
    %v107 = vld [vmem:[#allocation2 + $0x250] sm:$0xff]
    %vm108 = vcmask 195584
    %v110 = vsel %vm108, %v25, 0
    %v113 = vsel %vm108, %v26, 0
    %v116 = vsel %vm108, %v27, 0
    %v119 = vsel %vm108, %v28, 0
    %v122 = vsel %vm108, %v29, 0
    %v125 = vsel %vm108, %v30, 0
    %v128 = vsel %vm108, %v31, 0
    %v131 = vsel %vm108, %v32, 0
    %133 = vmatprep.subr.mxu0 %v34
    %134 = vmatpush1.msra.mxu0 %v33
    %135 = vmatprep.subr.mxu0 %v59
    %136 = vmatpush1.msra.mxu0 %v58
    %137 = vmatprep.subr.mxu0 %v84
    %138 = vmatpush1.msra.mxu0 %v83
    %139 = vmatprep.subr.mxu0 0.0
    %140 = vmatpush1.msra.mxu0 0.0
    %141 = vmatprep.subr.mxu0 0.0
    %142 = vmatpush1.msra.mxu0 0.0
    %143 = vmatprep.subr.mxu0 0.0
    %144 = vmatpush1.msra.mxu0 0.0
    %145 = vmatprep.subr.mxu0 0.0
    %146 = vmatpush1.msra.mxu0 0.0
    %147 = vmatprep.subr.mxu0 0.0
    %148 = vmatpush1.msra.mxu0 0.0
    %149 = vmatprep.subr.mxu0 0.0
    %150 = vmatpush1.msra.mxu0 0.0
    %151 = vmatprep.subr.mxu0 0.0
    %152 = vmatpush1.msra.mxu0 0.0
    %153 = vmatprep.subr.mxu0 0.0
    %154 = vmatpush1.msra.mxu0 0.0
    %155 = vmatprep.subr.mxu0 0.0
    %156 = vmatpush1.msra.mxu0 0.0
    %157 = vmatprep.subr.mxu0 0.0
    %158 = vmatpush1.msra.mxu0 0.0
    %159 = vmatprep.subr.mxu0 0.0
    %160 = vmatpush1.msra.mxu0 0.0
    %161 = vmatprep.subr.mxu0 0.0
    %162 = vmatpush1.msra.mxu0 0.0
    %163 = vmatprep.subr.mxu0 0.0
    %164 = vmatpush1.msra.mxu0 0.0
    %165 = vmatprep.subr.mxu0 0.0
    %166 = vmatpush1.msra.mxu0 0.0
    %167 = vmatprep.subr.mxu0 0.0
    %168 = vmatpush1.msra.mxu0 0.0
    %169 = vmatprep.subr.mxu0 0.0
    %170 = vmatpush1.msra.mxu0 0.0
    %171 = vmatprep.subr.mxu0 0.0
    %172 = vmatpush1.msra.mxu0 0.0
    %173 = vmatprep.subr.mxu0 0.0
    %174 = vmatpush1.msra.mxu0 0.0
    %175 = vmatprep.subr.mxu0 0.0
    %176 = vmatpush1.msra.mxu0 0.0
    %177 = vmatprep.subr.mxu0 0.0
    %178 = vmatpush1.msra.mxu0 0.0
    %179 = vmatprep.subr.mxu0 0.0
    %180 = vmatpush1.msra.mxu0 0.0
    %181 = vmatprep.subr.mxu0 0.0
    %182 = vmatpush1.msra.mxu0 0.0
    %183 = vmatprep.subr.mxu0 0.0
    %184 = vmatpush1.msra.mxu0 0.0
    %185 = vmatprep.subr.mxu0 0.0
    %186 = vmatpush1.msra.mxu0 0.0
    %187 = vmatprep.subr.mxu0 0.0
    %188 = vmatpush1.msra.mxu0 0.0
    %189 = vmatprep.subr.mxu0 0.0
    %190 = vmatpush1.msra.mxu0 0.0
    %191 = vmatprep.subr.mxu0 0.0
    %192 = vmatpush1.msra.mxu0 0.0
    %193 = vmatprep.subr.mxu0 0.0
    %194 = vmatpush1.msra.mxu0 0.0
    %195 = vmatprep.subr.mxu0 0.0
    %196 = vmatpush1.msra.mxu0 0.0
    %197 = vmatprep.mubr.f32.mxu0 0.0
    %198 = vmatmul.mubr.f32.gmra.mrb[0].mxu0 %v110
    %v199 = vpop.f32.mrb[0].mxu0
    %v200 = vadd.f32 0.0, %v199
    %v201 = vpop.f32.mrb[0].mxu0
    %v202 = vadd.f32 0.0, %v201
    %203 = vmatprep.mubr.f32.mxu0 0.0
    %204 = vmatmul.mubr.f32.gmra.mrb[0].mxu0 %v113
    %v205 = vpop.f32.mrb[0].mxu0
    %v206 = vadd.f32 0.0, %v205
    %v207 = vpop.f32.mrb[0].mxu0
    %v208 = vadd.f32 0.0, %v207
    %209 = vmatprep.mubr.f32.mxu0 0.0
    %210 = vmatmul.mubr.f32.gmra.mrb[0].mxu0 %v116
    %v211 = vpop.f32.mrb[0].mxu0
    %v212 = vadd.f32 0.0, %v211
    %v213 = vpop.f32.mrb[0].mxu0
    %v214 = vadd.f32 0.0, %v213
    %215 = vmatprep.mubr.f32.mxu0 0.0
    %216 = vmatmul.mubr.f32.gmra.mrb[0].mxu0 %v119
    %v217 = vpop.f32.mrb[0].mxu0
    %v218 = vadd.f32 0.0, %v217
    %v219 = vpop.f32.mrb[0].mxu0
    %v220 = vadd.f32 0.0, %v219
    %221 = vmatprep.mubr.f32.mxu0 0.0
    %222 = vmatmul.mubr.f32.gmra.mrb[0].mxu0 %v122
    %v223 = vpop.f32.mrb[0].mxu0
    %v224 = vadd.f32 0.0, %v223
    %v225 = vpop.f32.mrb[0].mxu0
    %v226 = vadd.f32 0.0, %v225
    %227 = vmatprep.mubr.f32.mxu0 0.0
    %228 = vmatmul.mubr.f32.gmra.mrb[0].mxu0 %v125
    %v229 = vpop.f32.mrb[0].mxu0
    %v230 = vadd.f32 0.0, %v229
    %v231 = vpop.f32.mrb[0].mxu0
    %v232 = vadd.f32 0.0, %v231
    %233 = vmatprep.mubr.f32.mxu0 0.0
    %234 = vmatmul.mubr.f32.gmra.mrb[0].mxu0 %v128
    %v235 = vpop.f32.mrb[0].mxu0
    %v236 = vadd.f32 0.0, %v235
    %v237 = vpop.f32.mrb[0].mxu0
    %v238 = vadd.f32 0.0, %v237
    %239 = vmatprep.mubr.f32.mxu0 0.0
    %240 = vmatmul.mubr.f32.gmra.mrb[0].mxu0 %v131
    %v241 = vpop.f32.mrb[0].mxu0
    %v242 = vadd.f32 0.0, %v241
    %v243 = vpop.f32.mrb[0].mxu0
    %v244 = vadd.f32 0.0, %v243
    %245 = vdwg.mxu0
    %246 = vmatprep.subr.mxu0 %v36
    %247 = vmatpush1.msra.mxu0 %v35
    %248 = vmatprep.subr.mxu0 %v61
    %249 = vmatpush1.msra.mxu0 %v60
    %250 = vmatprep.subr.mxu0 %v86
    %251 = vmatpush1.msra.mxu0 %v85
    %252 = vmatprep.subr.mxu0 0.0
    %253 = vmatpush1.msra.mxu0 0.0
    %254 = vmatprep.subr.mxu0 0.0
    %255 = vmatpush1.msra.mxu0 0.0
    %256 = vmatprep.subr.mxu0 0.0
    %257 = vmatpush1.msra.mxu0 0.0
    %258 = vmatprep.subr.mxu0 0.0
    %259 = vmatpush1.msra.mxu0 0.0
    %260 = vmatprep.subr.mxu0 0.0
    %261 = vmatpush1.msra.mxu0 0.0
    %262 = vmatprep.subr.mxu0 0.0
    %263 = vmatpush1.msra.mxu0 0.0
    %264 = vmatprep.subr.mxu0 0.0
    %265 = vmatpush1.msra.mxu0 0.0
    %266 = vmatprep.subr.mxu0 0.0
    %267 = vmatpush1.msra.mxu0 0.0
    %268 = vmatprep.subr.mxu0 0.0
    %269 = vmatpush1.msra.mxu0 0.0
    %270 = vmatprep.subr.mxu0 0.0
    %271 = vmatpush1.msra.mxu0 0.0
    %272 = vmatprep.subr.mxu0 0.0
    %273 = vmatpush1.msra.mxu0 0.0
    %274 = vmatprep.subr.mxu0 0.0
    %275 = vmatpush1.msra.mxu0 0.0
    %276 = vmatprep.subr.mxu0 0.0
    %277 = vmatpush1.msra.mxu0 0.0
    %278 = vmatprep.subr.mxu0 0.0
    %279 = vmatpush1.msra.mxu0 0.0
    %280 = vmatprep.subr.mxu0 0.0
    %281 = vmatpush1.msra.mxu0 0.0
    %282 = vmatprep.subr.mxu0 0.0
    %283 = vmatpush1.msra.mxu0 0.0
    %284 = vmatprep.subr.mxu0 0.0
    %285 = vmatpush1.msra.mxu0 0.0
    %286 = vmatprep.subr.mxu0 0.0
    %287 = vmatpush1.msra.mxu0 0.0
    %288 = vmatprep.subr.mxu0 0.0
    %289 = vmatpush1.msra.mxu0 0.0
    %290 = vmatprep.subr.mxu0 0.0
    %291 = vmatpush1.msra.mxu0 0.0
    %292 = vmatprep.subr.mxu0 0.0
    %293 = vmatpush1.msra.mxu0 0.0
    %294 = vmatprep.subr.mxu0 0.0
    %295 = vmatpush1.msra.mxu0 0.0
    %296 = vmatprep.subr.mxu0 0.0
    %297 = vmatpush1.msra.mxu0 0.0
    %298 = vmatprep.subr.mxu0 0.0
    %299 = vmatpush1.msra.mxu0 0.0
    %300 = vmatprep.subr.mxu0 0.0
    %301 = vmatpush1.msra.mxu0 0.0
    %302 = vmatprep.subr.mxu0 0.0
    %303 = vmatpush1.msra.mxu0 0.0
    %304 = vmatprep.subr.mxu0 0.0
    %305 = vmatpush1.msra.mxu0 0.0
    %306 = vmatprep.subr.mxu0 0.0
    %307 = vmatpush1.msra.mxu0 0.0
    %308 = vmatprep.subr.mxu0 0.0
    %309 = vmatpush1.msra.mxu0 0.0
    %310 = vmatprep.mubr.f32.mxu0 0.0
    %311 = vmatmul.mubr.f32.gmra.mrb[0].mxu0 %v110
    %v312 = vpop.f32.mrb[0].mxu0
    %v313 = vadd.f32 0.0, %v312
    %v314 = vpop.f32.mrb[0].mxu0
    %v315 = vadd.f32 0.0, %v314
    %316 = vmatprep.mubr.f32.mxu0 0.0
    %317 = vmatmul.mubr.f32.gmra.mrb[0].mxu0 %v113
    %v318 = vpop.f32.mrb[0].mxu0
    %v319 = vadd.f32 0.0, %v318
    %v320 = vpop.f32.mrb[0].mxu0
    %v321 = vadd.f32 0.0, %v320
    %322 = vmatprep.mubr.f32.mxu0 0.0
    %323 = vmatmul.mubr.f32.gmra.mrb[0].mxu0 %v116
    %v324 = vpop.f32.mrb[0].mxu0
    %v325 = vadd.f32 0.0, %v324
    %v326 = vpop.f32.mrb[0].mxu0
    %v327 = vadd.f32 0.0, %v326
    %328 = vmatprep.mubr.f32.mxu0 0.0
    %329 = vmatmul.mubr.f32.gmra.mrb[0].mxu0 %v119
    %v330 = vpop.f32.mrb[0].mxu0
    %v331 = vadd.f32 0.0, %v330
    %v332 = vpop.f32.mrb[0].mxu0
    %v333 = vadd.f32 0.0, %v332
    %334 = vmatprep.mubr.f32.mxu0 0.0
    %335 = vmatmul.mubr.f32.gmra.mrb[0].mxu0 %v122
    %v336 = vpop.f32.mrb[0].mxu0
    %v337 = vadd.f32 0.0, %v336
    %v338 = vpop.f32.mrb[0].mxu0
    %v339 = vadd.f32 0.0, %v338
    %340 = vmatprep.mubr.f32.mxu0 0.0
    %341 = vmatmul.mubr.f32.gmra.mrb[0].mxu0 %v125
    %v342 = vpop.f32.mrb[0].mxu0
    %v343 = vadd.f32 0.0, %v342
    %v344 = vpop.f32.mrb[0].mxu0
    %v345 = vadd.f32 0.0, %v344
    %346 = vmatprep.mubr.f32.mxu0 0.0
    %347 = vmatmul.mubr.f32.gmra.mrb[0].mxu0 %v128
    %v348 = vpop.f32.mrb[0].mxu0
    %v349 = vadd.f32 0.0, %v348
    %v350 = vpop.f32.mrb[0].mxu0
    %v351 = vadd.f32 0.0, %v350
    %352 = vmatprep.mubr.f32.mxu0 0.0
    %353 = vmatmul.mubr.f32.gmra.mrb[0].mxu0 %v131
    %v354 = vpop.f32.mrb[0].mxu0
    %v355 = vadd.f32 0.0, %v354
    %v356 = vpop.f32.mrb[0].mxu0
    %v357 = vadd.f32 0.0, %v356
    %358 = vdwg.mxu0
    %359 = vmatprep.subr.mxu0 %v38
    %360 = vmatpush1.msra.mxu0 %v37
    %361 = vmatprep.subr.mxu0 %v63
    %362 = vmatpush1.msra.mxu0 %v62
    %363 = vmatprep.subr.mxu0 %v88
    %364 = vmatpush1.msra.mxu0 %v87
    %365 = vmatprep.subr.mxu0 0.0
    %366 = vmatpush1.msra.mxu0 0.0
    %367 = vmatprep.subr.mxu0 0.0
    %368 = vmatpush1.msra.mxu0 0.0
    %369 = vmatprep.subr.mxu0 0.0
    %370 = vmatpush1.msra.mxu0 0.0
    %371 = vmatprep.subr.mxu0 0.0
    %372 = vmatpush1.msra.mxu0 0.0
    %373 = vmatprep.subr.mxu0 0.0
    %374 = vmatpush1.msra.mxu0 0.0
    %375 = vmatprep.subr.mxu0 0.0
    %376 = vmatpush1.msra.mxu0 0.0
    %377 = vmatprep.subr.mxu0 0.0
    %378 = vmatpush1.msra.mxu0 0.0
    %379 = vmatprep.subr.mxu0 0.0
    %380 = vmatpush1.msra.mxu0 0.0
    %381 = vmatprep.subr.mxu0 0.0
    %382 = vmatpush1.msra.mxu0 0.0
    %383 = vmatprep.subr.mxu0 0.0
    %384 = vmatpush1.msra.mxu0 0.0
    %385 = vmatprep.subr.mxu0 0.0
    %386 = vmatpush1.msra.mxu0 0.0
    %387 = vmatprep.subr.mxu0 0.0
    %388 = vmatpush1.msra.mxu0 0.0
    %389 = vmatprep.subr.mxu0 0.0
    %390 = vmatpush1.msra.mxu0 0.0
    %391 = vmatprep.subr.mxu0 0.0
    %392 = vmatpush1.msra.mxu0 0.0
    %393 = vmatprep.subr.mxu0 0.0
    %394 = vmatpush1.msra.mxu0 0.0
    %395 = vmatprep.subr.mxu0 0.0
    %396 = vmatpush1.msra.mxu0 0.0
    %397 = vmatprep.subr.mxu0 0.0
    %398 = vmatpush1.msra.mxu0 0.0
    %399 = vmatprep.subr.mxu0 0.0
    %400 = vmatpush1.msra.mxu0 0.0
    %401 = vmatprep.subr.mxu0 0.0
    %402 = vmatpush1.msra.mxu0 0.0
    %403 = vmatprep.subr.mxu0 0.0
    %404 = vmatpush1.msra.mxu0 0.0
    %405 = vmatprep.subr.mxu0 0.0
    %406 = vmatpush1.msra.mxu0 0.0
    %407 = vmatprep.subr.mxu0 0.0
    %408 = vmatpush1.msra.mxu0 0.0
    %409 = vmatprep.subr.mxu0 0.0
    %410 = vmatpush1.msra.mxu0 0.0
    %411 = vmatprep.subr.mxu0 0.0
    %412 = vmatpush1.msra.mxu0 0.0
    %413 = vmatprep.subr.mxu0 0.0
    %414 = vmatpush1.msra.mxu0 0.0
    %415 = vmatprep.subr.mxu0 0.0
    %416 = vmatpush1.msra.mxu0 0.0
    %417 = vmatprep.subr.mxu0 0.0
    %418 = vmatpush1.msra.mxu0 0.0
    %419 = vmatprep.subr.mxu0 0.0
    %420 = vmatpush1.msra.mxu0 0.0
    %421 = vmatprep.subr.mxu0 0.0
    %422 = vmatpush1.msra.mxu0 0.0
    %423 = vmatprep.mubr.f32.mxu0 0.0
    %424 = vmatmul.mubr.f32.gmra.mrb[0].mxu0 %v110
    %v425 = vpop.f32.mrb[0].mxu0
    %v426 = vadd.f32 0.0, %v425
    %v427 = vpop.f32.mrb[0].mxu0
    %v428 = vadd.f32 0.0, %v427
    %429 = vmatprep.mubr.f32.mxu0 0.0
    %430 = vmatmul.mubr.f32.gmra.mrb[0].mxu0 %v113
    %v431 = vpop.f32.mrb[0].mxu0
    %v432 = vadd.f32 0.0, %v431
    %v433 = vpop.f32.mrb[0].mxu0
    %v434 = vadd.f32 0.0, %v433
    %435 = vmatprep.mubr.f32.mxu0 0.0
    %436 = vmatmul.mubr.f32.gmra.mrb[0].mxu0 %v116
    %v437 = vpop.f32.mrb[0].mxu0
    %v438 = vadd.f32 0.0, %v437
    %v439 = vpop.f32.mrb[0].mxu0
    %v440 = vadd.f32 0.0, %v439
    %441 = vmatprep.mubr.f32.mxu0 0.0
    %442 = vmatmul.mubr.f32.gmra.mrb[0].mxu0 %v119
    %v443 = vpop.f32.mrb[0].mxu0
    %v444 = vadd.f32 0.0, %v443
    %v445 = vpop.f32.mrb[0].mxu0
    %v446 = vadd.f32 0.0, %v445
    %447 = vmatprep.mubr.f32.mxu0 0.0
    %448 = vmatmul.mubr.f32.gmra.mrb[0].mxu0 %v122
    %v449 = vpop.f32.mrb[0].mxu0
    %v450 = vadd.f32 0.0, %v449
    %v451 = vpop.f32.mrb[0].mxu0
    %v452 = vadd.f32 0.0, %v451
    %453 = vmatprep.mubr.f32.mxu0 0.0
    %454 = vmatmul.mubr.f32.gmra.mrb[0].mxu0 %v125
    %v455 = vpop.f32.mrb[0].mxu0
    %v456 = vadd.f32 0.0, %v455
    %v457 = vpop.f32.mrb[0].mxu0
    %v458 = vadd.f32 0.0, %v457
    %459 = vmatprep.mubr.f32.mxu0 0.0
    %460 = vmatmul.mubr.f32.gmra.mrb[0].mxu0 %v128
    %v461 = vpop.f32.mrb[0].mxu0
    %v462 = vadd.f32 0.0, %v461
    %v463 = vpop.f32.mrb[0].mxu0
    %v464 = vadd.f32 0.0, %v463
    %465 = vmatprep.mubr.f32.mxu0 0.0
    %466 = vmatmul.mubr.f32.gmra.mrb[0].mxu0 %v131
    %v467 = vpop.f32.mrb[0].mxu0
    %v468 = vadd.f32 0.0, %v467
    %v469 = vpop.f32.mrb[0].mxu0
    %v470 = vadd.f32 0.0, %v469
    %471 = vdwg.mxu0
    %472 = vmatprep.subr.mxu0 %v40
    %473 = vmatpush1.msra.mxu0 %v39
    %474 = vmatprep.subr.mxu0 %v65
    %475 = vmatpush1.msra.mxu0 %v64
    %476 = vmatprep.subr.mxu0 %v90
    %477 = vmatpush1.msra.mxu0 %v89
    %478 = vmatprep.subr.mxu0 0.0
    %479 = vmatpush1.msra.mxu0 0.0
    %480 = vmatprep.subr.mxu0 0.0
    %481 = vmatpush1.msra.mxu0 0.0
    %482 = vmatprep.subr.mxu0 0.0
    %483 = vmatpush1.msra.mxu0 0.0
    %484 = vmatprep.subr.mxu0 0.0
    %485 = vmatpush1.msra.mxu0 0.0
    %486 = vmatprep.subr.mxu0 0.0
    %487 = vmatpush1.msra.mxu0 0.0
    %488 = vmatprep.subr.mxu0 0.0
    %489 = vmatpush1.msra.mxu0 0.0
    %490 = vmatprep.subr.mxu0 0.0
    %491 = vmatpush1.msra.mxu0 0.0
    %492 = vmatprep.subr.mxu0 0.0
    %493 = vmatpush1.msra.mxu0 0.0
    %494 = vmatprep.subr.mxu0 0.0
    %495 = vmatpush1.msra.mxu0 0.0
    %496 = vmatprep.subr.mxu0 0.0
    %497 = vmatpush1.msra.mxu0 0.0
    %498 = vmatprep.subr.mxu0 0.0
    %499 = vmatpush1.msra.mxu0 0.0
    %500 = vmatprep.subr.mxu0 0.0
    %501 = vmatpush1.msra.mxu0 0.0
    %502 = vmatprep.subr.mxu0 0.0
    %503 = vmatpush1.msra.mxu0 0.0
    %504 = vmatprep.subr.mxu0 0.0
    %505 = vmatpush1.msra.mxu0 0.0
    %506 = vmatprep.subr.mxu0 0.0
    %507 = vmatpush1.msra.mxu0 0.0
    %508 = vmatprep.subr.mxu0 0.0
    %509 = vmatpush1.msra.mxu0 0.0
    %510 = vmatprep.subr.mxu0 0.0
    %511 = vmatpush1.msra.mxu0 0.0
    %512 = vmatprep.subr.mxu0 0.0
    %513 = vmatpush1.msra.mxu0 0.0
    %514 = vmatprep.subr.mxu0 0.0
    %515 = vmatpush1.msra.mxu0 0.0
    %516 = vmatprep.subr.mxu0 0.0
    %517 = vmatpush1.msra.mxu0 0.0
    %518 = vmatprep.subr.mxu0 0.0
    %519 = vmatpush1.msra.mxu0 0.0
    %520 = vmatprep.subr.mxu0 0.0
    %521 = vmatpush1.msra.mxu0 0.0
    %522 = vmatprep.subr.mxu0 0.0
    %523 = vmatpush1.msra.mxu0 0.0
    %524 = vmatprep.subr.mxu0 0.0
    %525 = vmatpush1.msra.mxu0 0.0
    %526 = vmatprep.subr.mxu0 0.0
    %527 = vmatpush1.msra.mxu0 0.0
    %528 = vmatprep.subr.mxu0 0.0
    %529 = vmatpush1.msra.mxu0 0.0
    %530 = vmatprep.subr.mxu0 0.0
    %531 = vmatpush1.msra.mxu0 0.0
    %532 = vmatprep.subr.mxu0 0.0
    %533 = vmatpush1.msra.mxu0 0.0
    %534 = vmatprep.subr.mxu0 0.0
    %535 = vmatpush1.msra.mxu0 0.0
    %536 = vmatprep.mubr.f32.mxu0 0.0
    %537 = vmatmul.mubr.f32.gmra.mrb[0].mxu0 %v110
    %v538 = vpop.f32.mrb[0].mxu0
    %v539 = vadd.f32 0.0, %v538
    %v540 = vpop.f32.mrb[0].mxu0
    %v541 = vadd.f32 0.0, %v540
    %542 = vmatprep.mubr.f32.mxu0 0.0
    %543 = vmatmul.mubr.f32.gmra.mrb[0].mxu0 %v113
    %v544 = vpop.f32.mrb[0].mxu0
    %v545 = vadd.f32 0.0, %v544
    %v546 = vpop.f32.mrb[0].mxu0
    %v547 = vadd.f32 0.0, %v546
    %548 = vmatprep.mubr.f32.mxu0 0.0
    %549 = vmatmul.mubr.f32.gmra.mrb[0].mxu0 %v116
    %v550 = vpop.f32.mrb[0].mxu0
    %v551 = vadd.f32 0.0, %v550
    %v552 = vpop.f32.mrb[0].mxu0
    %v553 = vadd.f32 0.0, %v552
    %554 = vmatprep.mubr.f32.mxu0 0.0
    %555 = vmatmul.mubr.f32.gmra.mrb[0].mxu0 %v119
    %v556 = vpop.f32.mrb[0].mxu0
    %v557 = vadd.f32 0.0, %v556
    %v558 = vpop.f32.mrb[0].mxu0
    %v559 = vadd.f32 0.0, %v558
    %560 = vmatprep.mubr.f32.mxu0 0.0
    %561 = vmatmul.mubr.f32.gmra.mrb[0].mxu0 %v122
    %v562 = vpop.f32.mrb[0].mxu0
    %v563 = vadd.f32 0.0, %v562
    %v564 = vpop.f32.mrb[0].mxu0
    %v565 = vadd.f32 0.0, %v564
    %566 = vmatprep.mubr.f32.mxu0 0.0
    %567 = vmatmul.mubr.f32.gmra.mrb[0].mxu0 %v125
    %v568 = vpop.f32.mrb[0].mxu0
    %v569 = vadd.f32 0.0, %v568
    %v570 = vpop.f32.mrb[0].mxu0
    %v571 = vadd.f32 0.0, %v570
    %572 = vmatprep.mubr.f32.mxu0 0.0
    %573 = vmatmul.mubr.f32.gmra.mrb[0].mxu0 %v128
    %v574 = vpop.f32.mrb[0].mxu0
    %v575 = vadd.f32 0.0, %v574
    %v576 = vpop.f32.mrb[0].mxu0
    %v577 = vadd.f32 0.0, %v576
    %578 = vmatprep.mubr.f32.mxu0 0.0
    %579 = vmatmul.mubr.f32.gmra.mrb[0].mxu0 %v131
    %v580 = vpop.f32.mrb[0].mxu0
    %v581 = vadd.f32 0.0, %v580
    %v582 = vpop.f32.mrb[0].mxu0
    %v583 = vadd.f32 0.0, %v582
    %584 = vdwg.mxu0
    %585 = vmatprep.subr.mxu0 %v42
    %586 = vmatpush1.msra.mxu0 %v41
    %587 = vmatprep.subr.mxu0 %v67
    %588 = vmatpush1.msra.mxu0 %v66
    %589 = vmatprep.subr.mxu0 %v92
    %590 = vmatpush1.msra.mxu0 %v91
    %591 = vmatprep.subr.mxu0 0.0
    %592 = vmatpush1.msra.mxu0 0.0
    %593 = vmatprep.subr.mxu0 0.0
    %594 = vmatpush1.msra.mxu0 0.0
    %595 = vmatprep.subr.mxu0 0.0
    %596 = vmatpush1.msra.mxu0 0.0
    %597 = vmatprep.subr.mxu0 0.0
    %598 = vmatpush1.msra.mxu0 0.0
    %599 = vmatprep.subr.mxu0 0.0
    %600 = vmatpush1.msra.mxu0 0.0
    %601 = vmatprep.subr.mxu0 0.0
    %602 = vmatpush1.msra.mxu0 0.0
    %603 = vmatprep.subr.mxu0 0.0
    %604 = vmatpush1.msra.mxu0 0.0
    %605 = vmatprep.subr.mxu0 0.0
    %606 = vmatpush1.msra.mxu0 0.0
    %607 = vmatprep.subr.mxu0 0.0
    %608 = vmatpush1.msra.mxu0 0.0
    %609 = vmatprep.subr.mxu0 0.0
    %610 = vmatpush1.msra.mxu0 0.0
    %611 = vmatprep.subr.mxu0 0.0
    %612 = vmatpush1.msra.mxu0 0.0
    %613 = vmatprep.subr.mxu0 0.0
    %614 = vmatpush1.msra.mxu0 0.0
    %615 = vmatprep.subr.mxu0 0.0
    %616 = vmatpush1.msra.mxu0 0.0
    %617 = vmatprep.subr.mxu0 0.0
    %618 = vmatpush1.msra.mxu0 0.0
    %619 = vmatprep.subr.mxu0 0.0
    %620 = vmatpush1.msra.mxu0 0.0
    %621 = vmatprep.subr.mxu0 0.0
    %622 = vmatpush1.msra.mxu0 0.0
    %623 = vmatprep.subr.mxu0 0.0
    %624 = vmatpush1.msra.mxu0 0.0
    %625 = vmatprep.subr.mxu0 0.0
    %626 = vmatpush1.msra.mxu0 0.0
    %627 = vmatprep.subr.mxu0 0.0
    %628 = vmatpush1.msra.mxu0 0.0
    %629 = vmatprep.subr.mxu0 0.0
    %630 = vmatpush1.msra.mxu0 0.0
    %631 = vmatprep.subr.mxu0 0.0
    %632 = vmatpush1.msra.mxu0 0.0
    %633 = vmatprep.subr.mxu0 0.0
    %634 = vmatpush1.msra.mxu0 0.0
    %635 = vmatprep.subr.mxu0 0.0
    %636 = vmatpush1.msra.mxu0 0.0
    %637 = vmatprep.subr.mxu0 0.0
    %638 = vmatpush1.msra.mxu0 0.0
    %639 = vmatprep.subr.mxu0 0.0
    %640 = vmatpush1.msra.mxu0 0.0
    %641 = vmatprep.subr.mxu0 0.0
    %642 = vmatpush1.msra.mxu0 0.0
    %643 = vmatprep.subr.mxu0 0.0
    %644 = vmatpush1.msra.mxu0 0.0
    %645 = vmatprep.subr.mxu0 0.0
    %646 = vmatpush1.msra.mxu0 0.0
    %647 = vmatprep.subr.mxu0 0.0
    %648 = vmatpush1.msra.mxu0 0.0
    %649 = vmatprep.mubr.f32.mxu0 0.0
    %650 = vmatmul.mubr.f32.gmra.mrb[0].mxu0 %v110
    %v651 = vpop.f32.mrb[0].mxu0
    %v652 = vadd.f32 0.0, %v651
    %v653 = vpop.f32.mrb[0].mxu0
    %v654 = vadd.f32 0.0, %v653
    %655 = vmatprep.mubr.f32.mxu0 0.0
    %656 = vmatmul.mubr.f32.gmra.mrb[0].mxu0 %v113
    %v657 = vpop.f32.mrb[0].mxu0
    %v658 = vadd.f32 0.0, %v657
    %v659 = vpop.f32.mrb[0].mxu0
    %v660 = vadd.f32 0.0, %v659
    %661 = vmatprep.mubr.f32.mxu0 0.0
    %662 = vmatmul.mubr.f32.gmra.mrb[0].mxu0 %v116
    %v663 = vpop.f32.mrb[0].mxu0
    %v664 = vadd.f32 0.0, %v663
    %v665 = vpop.f32.mrb[0].mxu0
    %v666 = vadd.f32 0.0, %v665
    %667 = vmatprep.mubr.f32.mxu0 0.0
    %668 = vmatmul.mubr.f32.gmra.mrb[0].mxu0 %v119
    %v669 = vpop.f32.mrb[0].mxu0
    %v670 = vadd.f32 0.0, %v669
    %v671 = vpop.f32.mrb[0].mxu0
    %v672 = vadd.f32 0.0, %v671
    %673 = vmatprep.mubr.f32.mxu0 0.0
    %674 = vmatmul.mubr.f32.gmra.mrb[0].mxu0 %v122
    %v675 = vpop.f32.mrb[0].mxu0
    %v676 = vadd.f32 0.0, %v675
    %v677 = vpop.f32.mrb[0].mxu0
    %v678 = vadd.f32 0.0, %v677
    %679 = vmatprep.mubr.f32.mxu0 0.0
    %680 = vmatmul.mubr.f32.gmra.mrb[0].mxu0 %v125
    %v681 = vpop.f32.mrb[0].mxu0
    %v682 = vadd.f32 0.0, %v681
    %v683 = vpop.f32.mrb[0].mxu0
    %v684 = vadd.f32 0.0, %v683
    %685 = vmatprep.mubr.f32.mxu0 0.0
    %686 = vmatmul.mubr.f32.gmra.mrb[0].mxu0 %v128
    %v687 = vpop.f32.mrb[0].mxu0
    %v688 = vadd.f32 0.0, %v687
    %v689 = vpop.f32.mrb[0].mxu0
    %v690 = vadd.f32 0.0, %v689
    %691 = vmatprep.mubr.f32.mxu0 0.0
    %692 = vmatmul.mubr.f32.gmra.mrb[0].mxu0 %v131
    %v693 = vpop.f32.mrb[0].mxu0
    %v694 = vadd.f32 0.0, %v693
    %v695 = vpop.f32.mrb[0].mxu0
    %v696 = vadd.f32 0.0, %v695
    %697 = vdwg.mxu0
    %698 = vmatprep.subr.mxu0 %v44
    %699 = vmatpush1.msra.mxu0 %v43
    %700 = vmatprep.subr.mxu0 %v69
    %701 = vmatpush1.msra.mxu0 %v68
    %702 = vmatprep.subr.mxu0 %v94
    %703 = vmatpush1.msra.mxu0 %v93
    %704 = vmatprep.subr.mxu0 0.0
    %705 = vmatpush1.msra.mxu0 0.0
    %706 = vmatprep.subr.mxu0 0.0
    %707 = vmatpush1.msra.mxu0 0.0
    %708 = vmatprep.subr.mxu0 0.0
    %709 = vmatpush1.msra.mxu0 0.0
    %710 = vmatprep.subr.mxu0 0.0
    %711 = vmatpush1.msra.mxu0 0.0
    %712 = vmatprep.subr.mxu0 0.0
    %713 = vmatpush1.msra.mxu0 0.0
    %714 = vmatprep.subr.mxu0 0.0
    %715 = vmatpush1.msra.mxu0 0.0
    %716 = vmatprep.subr.mxu0 0.0
    %717 = vmatpush1.msra.mxu0 0.0
    %718 = vmatprep.subr.mxu0 0.0
    %719 = vmatpush1.msra.mxu0 0.0
    %720 = vmatprep.subr.mxu0 0.0
    %721 = vmatpush1.msra.mxu0 0.0
    %722 = vmatprep.subr.mxu0 0.0
    %723 = vmatpush1.msra.mxu0 0.0
    %724 = vmatprep.subr.mxu0 0.0
    %725 = vmatpush1.msra.mxu0 0.0
    %726 = vmatprep.subr.mxu0 0.0
    %727 = vmatpush1.msra.mxu0 0.0
    %728 = vmatprep.subr.mxu0 0.0
    %729 = vmatpush1.msra.mxu0 0.0
    %730 = vmatprep.subr.mxu0 0.0
    %731 = vmatpush1.msra.mxu0 0.0
    %732 = vmatprep.subr.mxu0 0.0
    %733 = vmatpush1.msra.mxu0 0.0
    %734 = vmatprep.subr.mxu0 0.0
    %735 = vmatpush1.msra.mxu0 0.0
    %736 = vmatprep.subr.mxu0 0.0
    %737 = vmatpush1.msra.mxu0 0.0
    %738 = vmatprep.subr.mxu0 0.0
    %739 = vmatpush1.msra.mxu0 0.0
    %740 = vmatprep.subr.mxu0 0.0
    %741 = vmatpush1.msra.mxu0 0.0
    %742 = vmatprep.subr.mxu0 0.0
    %743 = vmatpush1.msra.mxu0 0.0
    %744 = vmatprep.subr.mxu0 0.0
    %745 = vmatpush1.msra.mxu0 0.0
    %746 = vmatprep.subr.mxu0 0.0
    %747 = vmatpush1.msra.mxu0 0.0
    %748 = vmatprep.subr.mxu0 0.0
    %749 = vmatpush1.msra.mxu0 0.0
    %750 = vmatprep.subr.mxu0 0.0
    %751 = vmatpush1.msra.mxu0 0.0
    %752 = vmatprep.subr.mxu0 0.0
    %753 = vmatpush1.msra.mxu0 0.0
    %754 = vmatprep.subr.mxu0 0.0
    %755 = vmatpush1.msra.mxu0 0.0
    %756 = vmatprep.subr.mxu0 0.0
    %757 = vmatpush1.msra.mxu0 0.0
    %758 = vmatprep.subr.mxu0 0.0
    %759 = vmatpush1.msra.mxu0 0.0
    %760 = vmatprep.subr.mxu0 0.0
    %761 = vmatpush1.msra.mxu0 0.0
    %762 = vmatprep.mubr.f32.mxu0 0.0
    %763 = vmatmul.mubr.f32.gmra.mrb[0].mxu0 %v110
    %v764 = vpop.f32.mrb[0].mxu0
    %v765 = vadd.f32 0.0, %v764
    %v766 = vpop.f32.mrb[0].mxu0
    %v767 = vadd.f32 0.0, %v766
    %768 = vmatprep.mubr.f32.mxu0 0.0
    %769 = vmatmul.mubr.f32.gmra.mrb[0].mxu0 %v113
    %v770 = vpop.f32.mrb[0].mxu0
    %v771 = vadd.f32 0.0, %v770
    %v772 = vpop.f32.mrb[0].mxu0
    %v773 = vadd.f32 0.0, %v772
    %774 = vmatprep.mubr.f32.mxu0 0.0
    %775 = vmatmul.mubr.f32.gmra.mrb[0].mxu0 %v116
    %v776 = vpop.f32.mrb[0].mxu0
    %v777 = vadd.f32 0.0, %v776
    %v778 = vpop.f32.mrb[0].mxu0
    %v779 = vadd.f32 0.0, %v778
    %780 = vmatprep.mubr.f32.mxu0 0.0
    %781 = vmatmul.mubr.f32.gmra.mrb[0].mxu0 %v119
    %v782 = vpop.f32.mrb[0].mxu0
    %v783 = vadd.f32 0.0, %v782
    %v784 = vpop.f32.mrb[0].mxu0
    %v785 = vadd.f32 0.0, %v784
    %786 = vmatprep.mubr.f32.mxu0 0.0
    %787 = vmatmul.mubr.f32.gmra.mrb[0].mxu0 %v122
    %v788 = vpop.f32.mrb[0].mxu0
    %v789 = vadd.f32 0.0, %v788
    %v790 = vpop.f32.mrb[0].mxu0
    %v791 = vadd.f32 0.0, %v790
    %792 = vmatprep.mubr.f32.mxu0 0.0
    %793 = vmatmul.mubr.f32.gmra.mrb[0].mxu0 %v125
    %v794 = vpop.f32.mrb[0].mxu0
    %v795 = vadd.f32 0.0, %v794
    %v796 = vpop.f32.mrb[0].mxu0
    %v797 = vadd.f32 0.0, %v796
    %798 = vmatprep.mubr.f32.mxu0 0.0
    %799 = vmatmul.mubr.f32.gmra.mrb[0].mxu0 %v128
    %v800 = vpop.f32.mrb[0].mxu0
    %v801 = vadd.f32 0.0, %v800
    %v802 = vpop.f32.mrb[0].mxu0
    %v803 = vadd.f32 0.0, %v802
    %804 = vmatprep.mubr.f32.mxu0 0.0
    %805 = vmatmul.mubr.f32.gmra.mrb[0].mxu0 %v131
    %v806 = vpop.f32.mrb[0].mxu0
    %v807 = vadd.f32 0.0, %v806
    %v808 = vpop.f32.mrb[0].mxu0
    %v809 = vadd.f32 0.0, %v808
    %810 = vdwg.mxu0
    %811 = vmatprep.subr.mxu0 %v46
    %812 = vmatpush1.msra.mxu0 %v45
    %813 = vmatprep.subr.mxu0 %v71
    %814 = vmatpush1.msra.mxu0 %v70
    %815 = vmatprep.subr.mxu0 %v96
    %816 = vmatpush1.msra.mxu0 %v95
    %817 = vmatprep.subr.mxu0 0.0
    %818 = vmatpush1.msra.mxu0 0.0
    %819 = vmatprep.subr.mxu0 0.0
    %820 = vmatpush1.msra.mxu0 0.0
    %821 = vmatprep.subr.mxu0 0.0
    %822 = vmatpush1.msra.mxu0 0.0
    %823 = vmatprep.subr.mxu0 0.0
    %824 = vmatpush1.msra.mxu0 0.0
    %825 = vmatprep.subr.mxu0 0.0
    %826 = vmatpush1.msra.mxu0 0.0
    %827 = vmatprep.subr.mxu0 0.0
    %828 = vmatpush1.msra.mxu0 0.0
    %829 = vmatprep.subr.mxu0 0.0
    %830 = vmatpush1.msra.mxu0 0.0
    %831 = vmatprep.subr.mxu0 0.0
    %832 = vmatpush1.msra.mxu0 0.0
    %833 = vmatprep.subr.mxu0 0.0
    %834 = vmatpush1.msra.mxu0 0.0
    %835 = vmatprep.subr.mxu0 0.0
    %836 = vmatpush1.msra.mxu0 0.0
    %837 = vmatprep.subr.mxu0 0.0
    %838 = vmatpush1.msra.mxu0 0.0
    %839 = vmatprep.subr.mxu0 0.0
    %840 = vmatpush1.msra.mxu0 0.0
    %841 = vmatprep.subr.mxu0 0.0
    %842 = vmatpush1.msra.mxu0 0.0
    %843 = vmatprep.subr.mxu0 0.0
    %844 = vmatpush1.msra.mxu0 0.0
    %845 = vmatprep.subr.mxu0 0.0
    %846 = vmatpush1.msra.mxu0 0.0
    %847 = vmatprep.subr.mxu0 0.0
    %848 = vmatpush1.msra.mxu0 0.0
    %849 = vmatprep.subr.mxu0 0.0
    %850 = vmatpush1.msra.mxu0 0.0
    %851 = vmatprep.subr.mxu0 0.0
    %852 = vmatpush1.msra.mxu0 0.0
    %853 = vmatprep.subr.mxu0 0.0
    %854 = vmatpush1.msra.mxu0 0.0
    %855 = vmatprep.subr.mxu0 0.0
    %856 = vmatpush1.msra.mxu0 0.0
    %857 = vmatprep.subr.mxu0 0.0
    %858 = vmatpush1.msra.mxu0 0.0
    %859 = vmatprep.subr.mxu0 0.0
    %860 = vmatpush1.msra.mxu0 0.0
    %861 = vmatprep.subr.mxu0 0.0
    %862 = vmatpush1.msra.mxu0 0.0
    %863 = vmatprep.subr.mxu0 0.0
    %864 = vmatpush1.msra.mxu0 0.0
    %865 = vmatprep.subr.mxu0 0.0
    %866 = vmatpush1.msra.mxu0 0.0
    %867 = vmatprep.subr.mxu0 0.0
    %868 = vmatpush1.msra.mxu0 0.0
    %869 = vmatprep.subr.mxu0 0.0
    %870 = vmatpush1.msra.mxu0 0.0
    %871 = vmatprep.subr.mxu0 0.0
    %872 = vmatpush1.msra.mxu0 0.0
    %873 = vmatprep.subr.mxu0 0.0
    %874 = vmatpush1.msra.mxu0 0.0
    %875 = vmatprep.mubr.f32.mxu0 0.0
    %876 = vmatmul.mubr.f32.gmra.mrb[0].mxu0 %v110
    %v877 = vpop.f32.mrb[0].mxu0
    %v878 = vadd.f32 0.0, %v877
    %v879 = vpop.f32.mrb[0].mxu0
    %v880 = vadd.f32 0.0, %v879
    %881 = vmatprep.mubr.f32.mxu0 0.0
    %882 = vmatmul.mubr.f32.gmra.mrb[0].mxu0 %v113
    %v883 = vpop.f32.mrb[0].mxu0
    %v884 = vadd.f32 0.0, %v883
    %v885 = vpop.f32.mrb[0].mxu0
    %v886 = vadd.f32 0.0, %v885
    %887 = vmatprep.mubr.f32.mxu0 0.0
    %888 = vmatmul.mubr.f32.gmra.mrb[0].mxu0 %v116
    %v889 = vpop.f32.mrb[0].mxu0
    %v890 = vadd.f32 0.0, %v889
    %v891 = vpop.f32.mrb[0].mxu0
    %v892 = vadd.f32 0.0, %v891
    %893 = vmatprep.mubr.f32.mxu0 0.0
    %894 = vmatmul.mubr.f32.gmra.mrb[0].mxu0 %v119
    %v895 = vpop.f32.mrb[0].mxu0
    %v896 = vadd.f32 0.0, %v895
    %v897 = vpop.f32.mrb[0].mxu0
    %v898 = vadd.f32 0.0, %v897
    %899 = vmatprep.mubr.f32.mxu0 0.0
    %900 = vmatmul.mubr.f32.gmra.mrb[0].mxu0 %v122
    %v901 = vpop.f32.mrb[0].mxu0
    %v902 = vadd.f32 0.0, %v901
    %v903 = vpop.f32.mrb[0].mxu0
    %v904 = vadd.f32 0.0, %v903
    %905 = vmatprep.mubr.f32.mxu0 0.0
    %906 = vmatmul.mubr.f32.gmra.mrb[0].mxu0 %v125
    %v907 = vpop.f32.mrb[0].mxu0
    %v908 = vadd.f32 0.0, %v907
    %v909 = vpop.f32.mrb[0].mxu0
    %v910 = vadd.f32 0.0, %v909
    %911 = vmatprep.mubr.f32.mxu0 0.0
    %912 = vmatmul.mubr.f32.gmra.mrb[0].mxu0 %v128
    %v913 = vpop.f32.mrb[0].mxu0
    %v914 = vadd.f32 0.0, %v913
    %v915 = vpop.f32.mrb[0].mxu0
    %v916 = vadd.f32 0.0, %v915
    %917 = vmatprep.mubr.f32.mxu0 0.0
    %918 = vmatmul.mubr.f32.gmra.mrb[0].mxu0 %v131
    %v919 = vpop.f32.mrb[0].mxu0
    %v920 = vadd.f32 0.0, %v919
    %v921 = vpop.f32.mrb[0].mxu0
    %v922 = vadd.f32 0.0, %v921
    %923 = vdwg.mxu0
    %924 = vmatprep.subr.mxu0 %v48
    %925 = vmatpush1.msra.mxu0 %v47
    %926 = vmatprep.subr.mxu0 %v73
    %927 = vmatpush1.msra.mxu0 %v72
    %928 = vmatprep.subr.mxu0 %v98
    %929 = vmatpush1.msra.mxu0 %v97
    %930 = vmatprep.subr.mxu0 0.0
    %931 = vmatpush1.msra.mxu0 0.0
    %932 = vmatprep.subr.mxu0 0.0
    %933 = vmatpush1.msra.mxu0 0.0
    %934 = vmatprep.subr.mxu0 0.0
    %935 = vmatpush1.msra.mxu0 0.0
    %936 = vmatprep.subr.mxu0 0.0
    %937 = vmatpush1.msra.mxu0 0.0
    %938 = vmatprep.subr.mxu0 0.0
    %939 = vmatpush1.msra.mxu0 0.0
    %940 = vmatprep.subr.mxu0 0.0
    %941 = vmatpush1.msra.mxu0 0.0
    %942 = vmatprep.subr.mxu0 0.0
    %943 = vmatpush1.msra.mxu0 0.0
    %944 = vmatprep.subr.mxu0 0.0
    %945 = vmatpush1.msra.mxu0 0.0
    %946 = vmatprep.subr.mxu0 0.0
    %947 = vmatpush1.msra.mxu0 0.0
    %948 = vmatprep.subr.mxu0 0.0
    %949 = vmatpush1.msra.mxu0 0.0
    %950 = vmatprep.subr.mxu0 0.0
    %951 = vmatpush1.msra.mxu0 0.0
    %952 = vmatprep.subr.mxu0 0.0
    %953 = vmatpush1.msra.mxu0 0.0
    %954 = vmatprep.subr.mxu0 0.0
    %955 = vmatpush1.msra.mxu0 0.0
    %956 = vmatprep.subr.mxu0 0.0
    %957 = vmatpush1.msra.mxu0 0.0
    %958 = vmatprep.subr.mxu0 0.0
    %959 = vmatpush1.msra.mxu0 0.0
    %960 = vmatprep.subr.mxu0 0.0
    %961 = vmatpush1.msra.mxu0 0.0
    %962 = vmatprep.subr.mxu0 0.0
    %963 = vmatpush1.msra.mxu0 0.0
    %964 = vmatprep.subr.mxu0 0.0
    %965 = vmatpush1.msra.mxu0 0.0
    %966 = vmatprep.subr.mxu0 0.0
    %967 = vmatpush1.msra.mxu0 0.0
    %968 = vmatprep.subr.mxu0 0.0
    %969 = vmatpush1.msra.mxu0 0.0
    %970 = vmatprep.subr.mxu0 0.0
    %971 = vmatpush1.msra.mxu0 0.0
    %972 = vmatprep.subr.mxu0 0.0
    %973 = vmatpush1.msra.mxu0 0.0
    %974 = vmatprep.subr.mxu0 0.0
    %975 = vmatpush1.msra.mxu0 0.0
    %976 = vmatprep.subr.mxu0 0.0
    %977 = vmatpush1.msra.mxu0 0.0
    %978 = vmatprep.subr.mxu0 0.0
    %979 = vmatpush1.msra.mxu0 0.0
    %980 = vmatprep.subr.mxu0 0.0
    %981 = vmatpush1.msra.mxu0 0.0
    %982 = vmatprep.subr.mxu0 0.0
    %983 = vmatpush1.msra.mxu0 0.0
    %984 = vmatprep.subr.mxu0 0.0
    %985 = vmatpush1.msra.mxu0 0.0
    %986 = vmatprep.subr.mxu0 0.0
    %987 = vmatpush1.msra.mxu0 0.0
    %988 = vmatprep.mubr.f32.mxu0 0.0
    %989 = vmatmul.mubr.f32.gmra.mrb[0].mxu0 %v110
    %v990 = vpop.f32.mrb[0].mxu0
    %v991 = vadd.f32 0.0, %v990
    %v992 = vpop.f32.mrb[0].mxu0
    %v993 = vadd.f32 0.0, %v992
    %994 = vmatprep.mubr.f32.mxu0 0.0
    %995 = vmatmul.mubr.f32.gmra.mrb[0].mxu0 %v113
    %v996 = vpop.f32.mrb[0].mxu0
    %v997 = vadd.f32 0.0, %v996
    %v998 = vpop.f32.mrb[0].mxu0
    %v999 = vadd.f32 0.0, %v998
    %1000 = vmatprep.mubr.f32.mxu0 0.0
    %1001 = vmatmul.mubr.f32.gmra.mrb[0].mxu0 %v116
    %v1002 = vpop.f32.mrb[0].mxu0
    %v1003 = vadd.f32 0.0, %v1002
    %v1004 = vpop.f32.mrb[0].mxu0
    %v1005 = vadd.f32 0.0, %v1004
    %1006 = vmatprep.mubr.f32.mxu0 0.0
    %1007 = vmatmul.mubr.f32.gmra.mrb[0].mxu0 %v119
    %v1008 = vpop.f32.mrb[0].mxu0
    %v1009 = vadd.f32 0.0, %v1008
    %v1010 = vpop.f32.mrb[0].mxu0
    %v1011 = vadd.f32 0.0, %v1010
    %1012 = vmatprep.mubr.f32.mxu0 0.0
    %1013 = vmatmul.mubr.f32.gmra.mrb[0].mxu0 %v122
    %v1014 = vpop.f32.mrb[0].mxu0
    %v1015 = vadd.f32 0.0, %v1014
    %v1016 = vpop.f32.mrb[0].mxu0
    %v1017 = vadd.f32 0.0, %v1016
    %1018 = vmatprep.mubr.f32.mxu0 0.0
    %1019 = vmatmul.mubr.f32.gmra.mrb[0].mxu0 %v125
    %v1020 = vpop.f32.mrb[0].mxu0
    %v1021 = vadd.f32 0.0, %v1020
    %v1022 = vpop.f32.mrb[0].mxu0
    %v1023 = vadd.f32 0.0, %v1022
    %1024 = vmatprep.mubr.f32.mxu0 0.0
    %1025 = vmatmul.mubr.f32.gmra.mrb[0].mxu0 %v128
    %v1026 = vpop.f32.mrb[0].mxu0
    %v1027 = vadd.f32 0.0, %v1026
    %v1028 = vpop.f32.mrb[0].mxu0
    %v1029 = vadd.f32 0.0, %v1028
    %1030 = vmatprep.mubr.f32.mxu0 0.0
    %1031 = vmatmul.mubr.f32.gmra.mrb[0].mxu0 %v131
    %v1032 = vpop.f32.mrb[0].mxu0
    %v1033 = vadd.f32 0.0, %v1032
    %v1034 = vpop.f32.mrb[0].mxu0
    %v1035 = vadd.f32 0.0, %v1034
    %1036 = vdwg.mxu0
    %1037 = vmatprep.subr.mxu0 %v50
    %1038 = vmatpush1.msra.mxu0 %v49
    %1039 = vmatprep.subr.mxu0 %v75
    %1040 = vmatpush1.msra.mxu0 %v74
    %1041 = vmatprep.subr.mxu0 %v100
    %1042 = vmatpush1.msra.mxu0 %v99
    %1043 = vmatprep.subr.mxu0 0.0
    %1044 = vmatpush1.msra.mxu0 0.0
    %1045 = vmatprep.subr.mxu0 0.0
    %1046 = vmatpush1.msra.mxu0 0.0
    %1047 = vmatprep.subr.mxu0 0.0
    %1048 = vmatpush1.msra.mxu0 0.0
    %1049 = vmatprep.subr.mxu0 0.0
    %1050 = vmatpush1.msra.mxu0 0.0
    %1051 = vmatprep.subr.mxu0 0.0
    %1052 = vmatpush1.msra.mxu0 0.0
    %1053 = vmatprep.subr.mxu0 0.0
    %1054 = vmatpush1.msra.mxu0 0.0
    %1055 = vmatprep.subr.mxu0 0.0
    %1056 = vmatpush1.msra.mxu0 0.0
    %1057 = vmatprep.subr.mxu0 0.0
    %1058 = vmatpush1.msra.mxu0 0.0
    %1059 = vmatprep.subr.mxu0 0.0
    %1060 = vmatpush1.msra.mxu0 0.0
    %1061 = vmatprep.subr.mxu0 0.0
    %1062 = vmatpush1.msra.mxu0 0.0
    %1063 = vmatprep.subr.mxu0 0.0
    %1064 = vmatpush1.msra.mxu0 0.0
    %1065 = vmatprep.subr.mxu0 0.0
    %1066 = vmatpush1.msra.mxu0 0.0
    %1067 = vmatprep.subr.mxu0 0.0
    %1068 = vmatpush1.msra.mxu0 0.0
    %1069 = vmatprep.subr.mxu0 0.0
    %1070 = vmatpush1.msra.mxu0 0.0
    %1071 = vmatprep.subr.mxu0 0.0
    %1072 = vmatpush1.msra.mxu0 0.0
    %1073 = vmatprep.subr.mxu0 0.0
    %1074 = vmatpush1.msra.mxu0 0.0
    %1075 = vmatprep.subr.mxu0 0.0
    %1076 = vmatpush1.msra.mxu0 0.0
    %1077 = vmatprep.subr.mxu0 0.0
    %1078 = vmatpush1.msra.mxu0 0.0
    %1079 = vmatprep.subr.mxu0 0.0
    %1080 = vmatpush1.msra.mxu0 0.0
    %1081 = vmatprep.subr.mxu0 0.0
    %1082 = vmatpush1.msra.mxu0 0.0
    %1083 = vmatprep.subr.mxu0 0.0
    %1084 = vmatpush1.msra.mxu0 0.0
    %1085 = vmatprep.subr.mxu0 0.0
    %1086 = vmatpush1.msra.mxu0 0.0
    %1087 = vmatprep.subr.mxu0 0.0
    %1088 = vmatpush1.msra.mxu0 0.0
    %1089 = vmatprep.subr.mxu0 0.0
    %1090 = vmatpush1.msra.mxu0 0.0
    %1091 = vmatprep.subr.mxu0 0.0
    %1092 = vmatpush1.msra.mxu0 0.0
    %1093 = vmatprep.subr.mxu0 0.0
    %1094 = vmatpush1.msra.mxu0 0.0
    %1095 = vmatprep.subr.mxu0 0.0
    %1096 = vmatpush1.msra.mxu0 0.0
    %1097 = vmatprep.subr.mxu0 0.0
    %1098 = vmatpush1.msra.mxu0 0.0
    %1099 = vmatprep.subr.mxu0 0.0
    %1100 = vmatpush1.msra.mxu0 0.0
    %1101 = vmatprep.mubr.f32.mxu0 0.0
    %1102 = vmatmul.mubr.f32.gmra.mrb[0].mxu0 %v110
    %v1103 = vpop.f32.mrb[0].mxu0
    %v1104 = vadd.f32 0.0, %v1103
    %v1105 = vpop.f32.mrb[0].mxu0
    %v1106 = vadd.f32 0.0, %v1105
    %1107 = vmatprep.mubr.f32.mxu0 0.0
    %1108 = vmatmul.mubr.f32.gmra.mrb[0].mxu0 %v113
    %v1109 = vpop.f32.mrb[0].mxu0
    %v1110 = vadd.f32 0.0, %v1109
    %v1111 = vpop.f32.mrb[0].mxu0
    %v1112 = vadd.f32 0.0, %v1111
    %1113 = vmatprep.mubr.f32.mxu0 0.0
    %1114 = vmatmul.mubr.f32.gmra.mrb[0].mxu0 %v116
    %v1115 = vpop.f32.mrb[0].mxu0
    %v1116 = vadd.f32 0.0, %v1115
    %v1117 = vpop.f32.mrb[0].mxu0
    %v1118 = vadd.f32 0.0, %v1117
    %1119 = vmatprep.mubr.f32.mxu0 0.0
    %1120 = vmatmul.mubr.f32.gmra.mrb[0].mxu0 %v119
    %v1121 = vpop.f32.mrb[0].mxu0
    %v1122 = vadd.f32 0.0, %v1121
    %v1123 = vpop.f32.mrb[0].mxu0
    %v1124 = vadd.f32 0.0, %v1123
    %1125 = vmatprep.mubr.f32.mxu0 0.0
    %1126 = vmatmul.mubr.f32.gmra.mrb[0].mxu0 %v122
    %v1127 = vpop.f32.mrb[0].mxu0
    %v1128 = vadd.f32 0.0, %v1127
    %v1129 = vpop.f32.mrb[0].mxu0
    %v1130 = vadd.f32 0.0, %v1129
    %1131 = vmatprep.mubr.f32.mxu0 0.0
    %1132 = vmatmul.mubr.f32.gmra.mrb[0].mxu0 %v125
    %v1133 = vpop.f32.mrb[0].mxu0
    %v1134 = vadd.f32 0.0, %v1133
    %v1135 = vpop.f32.mrb[0].mxu0
    %v1136 = vadd.f32 0.0, %v1135
    %1137 = vmatprep.mubr.f32.mxu0 0.0
    %1138 = vmatmul.mubr.f32.gmra.mrb[0].mxu0 %v128
    %v1139 = vpop.f32.mrb[0].mxu0
    %v1140 = vadd.f32 0.0, %v1139
    %v1141 = vpop.f32.mrb[0].mxu0
    %v1142 = vadd.f32 0.0, %v1141
    %1143 = vmatprep.mubr.f32.mxu0 0.0
    %1144 = vmatmul.mubr.f32.gmra.mrb[0].mxu0 %v131
    %v1145 = vpop.f32.mrb[0].mxu0
    %v1146 = vadd.f32 0.0, %v1145
    %v1147 = vpop.f32.mrb[0].mxu0
    %v1148 = vadd.f32 0.0, %v1147
    %1149 = vdwg.mxu0
    %1150 = vmatprep.subr.mxu0 %v52
    %1151 = vmatpush1.msra.mxu0 %v51
    %1152 = vmatprep.subr.mxu0 %v77
    %1153 = vmatpush1.msra.mxu0 %v76
    %1154 = vmatprep.subr.mxu0 %v102
    %1155 = vmatpush1.msra.mxu0 %v101
    %1156 = vmatprep.subr.mxu0 0.0
    %1157 = vmatpush1.msra.mxu0 0.0
    %1158 = vmatprep.subr.mxu0 0.0
    %1159 = vmatpush1.msra.mxu0 0.0
    %1160 = vmatprep.subr.mxu0 0.0
    %1161 = vmatpush1.msra.mxu0 0.0
    %1162 = vmatprep.subr.mxu0 0.0
    %1163 = vmatpush1.msra.mxu0 0.0
    %1164 = vmatprep.subr.mxu0 0.0
    %1165 = vmatpush1.msra.mxu0 0.0
    %1166 = vmatprep.subr.mxu0 0.0
    %1167 = vmatpush1.msra.mxu0 0.0
    %1168 = vmatprep.subr.mxu0 0.0
    %1169 = vmatpush1.msra.mxu0 0.0
    %1170 = vmatprep.subr.mxu0 0.0
    %1171 = vmatpush1.msra.mxu0 0.0
    %1172 = vmatprep.subr.mxu0 0.0
    %1173 = vmatpush1.msra.mxu0 0.0
    %1174 = vmatprep.subr.mxu0 0.0
    %1175 = vmatpush1.msra.mxu0 0.0
    %1176 = vmatprep.subr.mxu0 0.0
    %1177 = vmatpush1.msra.mxu0 0.0
    %1178 = vmatprep.subr.mxu0 0.0
    %1179 = vmatpush1.msra.mxu0 0.0
    %1180 = vmatprep.subr.mxu0 0.0
    %1181 = vmatpush1.msra.mxu0 0.0
    %1182 = vmatprep.subr.mxu0 0.0
    %1183 = vmatpush1.msra.mxu0 0.0
    %1184 = vmatprep.subr.mxu0 0.0
    %1185 = vmatpush1.msra.mxu0 0.0
    %1186 = vmatprep.subr.mxu0 0.0
    %1187 = vmatpush1.msra.mxu0 0.0
    %1188 = vmatprep.subr.mxu0 0.0
    %1189 = vmatpush1.msra.mxu0 0.0
    %1190 = vmatprep.subr.mxu0 0.0
    %1191 = vmatpush1.msra.mxu0 0.0
    %1192 = vmatprep.subr.mxu0 0.0
    %1193 = vmatpush1.msra.mxu0 0.0
    %1194 = vmatprep.subr.mxu0 0.0
    %1195 = vmatpush1.msra.mxu0 0.0
    %1196 = vmatprep.subr.mxu0 0.0
    %1197 = vmatpush1.msra.mxu0 0.0
    %1198 = vmatprep.subr.mxu0 0.0
    %1199 = vmatpush1.msra.mxu0 0.0
    %1200 = vmatprep.subr.mxu0 0.0
    %1201 = vmatpush1.msra.mxu0 0.0
    %1202 = vmatprep.subr.mxu0 0.0
    %1203 = vmatpush1.msra.mxu0 0.0
    %1204 = vmatprep.subr.mxu0 0.0
    %1205 = vmatpush1.msra.mxu0 0.0
    %1206 = vmatprep.subr.mxu0 0.0
    %1207 = vmatpush1.msra.mxu0 0.0
    %1208 = vmatprep.subr.mxu0 0.0
    %1209 = vmatpush1.msra.mxu0 0.0
    %1210 = vmatprep.subr.mxu0 0.0
    %1211 = vmatpush1.msra.mxu0 0.0
    %1212 = vmatprep.subr.mxu0 0.0
    %1213 = vmatpush1.msra.mxu0 0.0
    %1214 = vmatprep.mubr.f32.mxu0 0.0
    %1215 = vmatmul.mubr.f32.gmra.mrb[0].mxu0 %v110
    %v1216 = vpop.f32.mrb[0].mxu0
    %v1217 = vadd.f32 0.0, %v1216
    %v1218 = vpop.f32.mrb[0].mxu0
    %v1219 = vadd.f32 0.0, %v1218
    %1220 = vmatprep.mubr.f32.mxu0 0.0
    %1221 = vmatmul.mubr.f32.gmra.mrb[0].mxu0 %v113
    %v1222 = vpop.f32.mrb[0].mxu0
    %v1223 = vadd.f32 0.0, %v1222
    %v1224 = vpop.f32.mrb[0].mxu0
    %v1225 = vadd.f32 0.0, %v1224
    %1226 = vmatprep.mubr.f32.mxu0 0.0
    %1227 = vmatmul.mubr.f32.gmra.mrb[0].mxu0 %v116
    %v1228 = vpop.f32.mrb[0].mxu0
    %v1229 = vadd.f32 0.0, %v1228
    %v1230 = vpop.f32.mrb[0].mxu0
    %v1231 = vadd.f32 0.0, %v1230
    %1232 = vmatprep.mubr.f32.mxu0 0.0
    %1233 = vmatmul.mubr.f32.gmra.mrb[0].mxu0 %v119
    %v1234 = vpop.f32.mrb[0].mxu0
    %v1235 = vadd.f32 0.0, %v1234
    %v1236 = vpop.f32.mrb[0].mxu0
    %v1237 = vadd.f32 0.0, %v1236
    %1238 = vmatprep.mubr.f32.mxu0 0.0
    %1239 = vmatmul.mubr.f32.gmra.mrb[0].mxu0 %v122
    %v1240 = vpop.f32.mrb[0].mxu0
    %v1241 = vadd.f32 0.0, %v1240
    %v1242 = vpop.f32.mrb[0].mxu0
    %v1243 = vadd.f32 0.0, %v1242
    %1244 = vmatprep.mubr.f32.mxu0 0.0
    %1245 = vmatmul.mubr.f32.gmra.mrb[0].mxu0 %v125
    %v1246 = vpop.f32.mrb[0].mxu0
    %v1247 = vadd.f32 0.0, %v1246
    %v1248 = vpop.f32.mrb[0].mxu0
    %v1249 = vadd.f32 0.0, %v1248
    %1250 = vmatprep.mubr.f32.mxu0 0.0
    %1251 = vmatmul.mubr.f32.gmra.mrb[0].mxu0 %v128
    %v1252 = vpop.f32.mrb[0].mxu0
    %v1253 = vadd.f32 0.0, %v1252
    %v1254 = vpop.f32.mrb[0].mxu0
    %v1255 = vadd.f32 0.0, %v1254
    %1256 = vmatprep.mubr.f32.mxu0 0.0
    %1257 = vmatmul.mubr.f32.gmra.mrb[0].mxu0 %v131
    %v1258 = vpop.f32.mrb[0].mxu0
    %v1259 = vadd.f32 0.0, %v1258
    %v1260 = vpop.f32.mrb[0].mxu0
    %v1261 = vadd.f32 0.0, %v1260
    %1262 = vdwg.mxu0
    %1263 = vmatprep.subr.mxu0 %v54
    %1264 = vmatpush1.msra.mxu0 %v53
    %1265 = vmatprep.subr.mxu0 %v79
    %1266 = vmatpush1.msra.mxu0 %v78
    %1267 = vmatprep.subr.mxu0 %v104
    %1268 = vmatpush1.msra.mxu0 %v103
    %1269 = vmatprep.subr.mxu0 0.0
    %1270 = vmatpush1.msra.mxu0 0.0
    %1271 = vmatprep.subr.mxu0 0.0
    %1272 = vmatpush1.msra.mxu0 0.0
    %1273 = vmatprep.subr.mxu0 0.0
    %1274 = vmatpush1.msra.mxu0 0.0
    %1275 = vmatprep.subr.mxu0 0.0
    %1276 = vmatpush1.msra.mxu0 0.0
    %1277 = vmatprep.subr.mxu0 0.0
    %1278 = vmatpush1.msra.mxu0 0.0
    %1279 = vmatprep.subr.mxu0 0.0
    %1280 = vmatpush1.msra.mxu0 0.0
    %1281 = vmatprep.subr.mxu0 0.0
    %1282 = vmatpush1.msra.mxu0 0.0
    %1283 = vmatprep.subr.mxu0 0.0
    %1284 = vmatpush1.msra.mxu0 0.0
    %1285 = vmatprep.subr.mxu0 0.0
    %1286 = vmatpush1.msra.mxu0 0.0
    %1287 = vmatprep.subr.mxu0 0.0
    %1288 = vmatpush1.msra.mxu0 0.0
    %1289 = vmatprep.subr.mxu0 0.0
    %1290 = vmatpush1.msra.mxu0 0.0
    %1291 = vmatprep.subr.mxu0 0.0
    %1292 = vmatpush1.msra.mxu0 0.0
    %1293 = vmatprep.subr.mxu0 0.0
    %1294 = vmatpush1.msra.mxu0 0.0
    %1295 = vmatprep.subr.mxu0 0.0
    %1296 = vmatpush1.msra.mxu0 0.0
    %1297 = vmatprep.subr.mxu0 0.0
    %1298 = vmatpush1.msra.mxu0 0.0
    %1299 = vmatprep.subr.mxu0 0.0
    %1300 = vmatpush1.msra.mxu0 0.0
    %1301 = vmatprep.subr.mxu0 0.0
    %1302 = vmatpush1.msra.mxu0 0.0
    %1303 = vmatprep.subr.mxu0 0.0
    %1304 = vmatpush1.msra.mxu0 0.0
    %1305 = vmatprep.subr.mxu0 0.0
    %1306 = vmatpush1.msra.mxu0 0.0
    %1307 = vmatprep.subr.mxu0 0.0
    %1308 = vmatpush1.msra.mxu0 0.0
    %1309 = vmatprep.subr.mxu0 0.0
    %1310 = vmatpush1.msra.mxu0 0.0
    %1311 = vmatprep.subr.mxu0 0.0
    %1312 = vmatpush1.msra.mxu0 0.0
    %1313 = vmatprep.subr.mxu0 0.0
    %1314 = vmatpush1.msra.mxu0 0.0
    %1315 = vmatprep.subr.mxu0 0.0
    %1316 = vmatpush1.msra.mxu0 0.0
    %1317 = vmatprep.subr.mxu0 0.0
    %1318 = vmatpush1.msra.mxu0 0.0
    %1319 = vmatprep.subr.mxu0 0.0
    %1320 = vmatpush1.msra.mxu0 0.0
    %1321 = vmatprep.subr.mxu0 0.0
    %1322 = vmatpush1.msra.mxu0 0.0
    %1323 = vmatprep.subr.mxu0 0.0
    %1324 = vmatpush1.msra.mxu0 0.0
    %1325 = vmatprep.subr.mxu0 0.0
    %1326 = vmatpush1.msra.mxu0 0.0
    %1327 = vmatprep.mubr.f32.mxu0 0.0
    %1328 = vmatmul.mubr.f32.gmra.mrb[0].mxu0 %v110
    %v1329 = vpop.f32.mrb[0].mxu0
    %v1330 = vadd.f32 0.0, %v1329
    %v1331 = vpop.f32.mrb[0].mxu0
    %v1332 = vadd.f32 0.0, %v1331
    %1333 = vmatprep.mubr.f32.mxu0 0.0
    %1334 = vmatmul.mubr.f32.gmra.mrb[0].mxu0 %v113
    %v1335 = vpop.f32.mrb[0].mxu0
    %v1336 = vadd.f32 0.0, %v1335
    %v1337 = vpop.f32.mrb[0].mxu0
    %v1338 = vadd.f32 0.0, %v1337
    %1339 = vmatprep.mubr.f32.mxu0 0.0
    %1340 = vmatmul.mubr.f32.gmra.mrb[0].mxu0 %v116
    %v1341 = vpop.f32.mrb[0].mxu0
    %v1342 = vadd.f32 0.0, %v1341
    %v1343 = vpop.f32.mrb[0].mxu0
    %v1344 = vadd.f32 0.0, %v1343
    %1345 = vmatprep.mubr.f32.mxu0 0.0
    %1346 = vmatmul.mubr.f32.gmra.mrb[0].mxu0 %v119
    %v1347 = vpop.f32.mrb[0].mxu0
    %v1348 = vadd.f32 0.0, %v1347
    %v1349 = vpop.f32.mrb[0].mxu0
    %v1350 = vadd.f32 0.0, %v1349
    %1351 = vmatprep.mubr.f32.mxu0 0.0
    %1352 = vmatmul.mubr.f32.gmra.mrb[0].mxu0 %v122
    %v1353 = vpop.f32.mrb[0].mxu0
    %v1354 = vadd.f32 0.0, %v1353
    %v1355 = vpop.f32.mrb[0].mxu0
    %v1356 = vadd.f32 0.0, %v1355
    %1357 = vmatprep.mubr.f32.mxu0 0.0
    %1358 = vmatmul.mubr.f32.gmra.mrb[0].mxu0 %v125
    %v1359 = vpop.f32.mrb[0].mxu0
    %v1360 = vadd.f32 0.0, %v1359
    %v1361 = vpop.f32.mrb[0].mxu0
    %v1362 = vadd.f32 0.0, %v1361
    %1363 = vmatprep.mubr.f32.mxu0 0.0
    %1364 = vmatmul.mubr.f32.gmra.mrb[0].mxu0 %v128
    %v1365 = vpop.f32.mrb[0].mxu0
    %v1366 = vadd.f32 0.0, %v1365
    %v1367 = vpop.f32.mrb[0].mxu0
    %v1368 = vadd.f32 0.0, %v1367
    %1369 = vmatprep.mubr.f32.mxu0 0.0
    %1370 = vmatmul.mubr.f32.gmra.mrb[0].mxu0 %v131
    %v1371 = vpop.f32.mrb[0].mxu0
    %v1372 = vadd.f32 0.0, %v1371
    %v1373 = vpop.f32.mrb[0].mxu0
    %v1374 = vadd.f32 0.0, %v1373
    %1375 = vdwg.mxu0
    %1376 = vmatprep.subr.mxu0 %v56
    %1377 = vmatpush1.msra.mxu0 %v55
    %1378 = vmatprep.subr.mxu0 %v81
    %1379 = vmatpush1.msra.mxu0 %v80
    %1380 = vmatprep.subr.mxu0 %v106
    %1381 = vmatpush1.msra.mxu0 %v105
    %1382 = vmatprep.subr.mxu0 0.0
    %1383 = vmatpush1.msra.mxu0 0.0
    %1384 = vmatprep.subr.mxu0 0.0
    %1385 = vmatpush1.msra.mxu0 0.0
    %1386 = vmatprep.subr.mxu0 0.0
    %1387 = vmatpush1.msra.mxu0 0.0
    %1388 = vmatprep.subr.mxu0 0.0
    %1389 = vmatpush1.msra.mxu0 0.0
    %1390 = vmatprep.subr.mxu0 0.0
    %1391 = vmatpush1.msra.mxu0 0.0
    %1392 = vmatprep.subr.mxu0 0.0
    %1393 = vmatpush1.msra.mxu0 0.0
    %1394 = vmatprep.subr.mxu0 0.0
    %1395 = vmatpush1.msra.mxu0 0.0
    %1396 = vmatprep.subr.mxu0 0.0
    %1397 = vmatpush1.msra.mxu0 0.0
    %1398 = vmatprep.subr.mxu0 0.0
    %1399 = vmatpush1.msra.mxu0 0.0
    %1400 = vmatprep.subr.mxu0 0.0
    %1401 = vmatpush1.msra.mxu0 0.0
    %1402 = vmatprep.subr.mxu0 0.0
    %1403 = vmatpush1.msra.mxu0 0.0
    %1404 = vmatprep.subr.mxu0 0.0
    %1405 = vmatpush1.msra.mxu0 0.0
    %1406 = vmatprep.subr.mxu0 0.0
    %1407 = vmatpush1.msra.mxu0 0.0
    %1408 = vmatprep.subr.mxu0 0.0
    %1409 = vmatpush1.msra.mxu0 0.0
    %1410 = vmatprep.subr.mxu0 0.0
    %1411 = vmatpush1.msra.mxu0 0.0
    %1412 = vmatprep.subr.mxu0 0.0
    %1413 = vmatpush1.msra.mxu0 0.0
    %1414 = vmatprep.subr.mxu0 0.0
    %1415 = vmatpush1.msra.mxu0 0.0
    %1416 = vmatprep.subr.mxu0 0.0
    %1417 = vmatpush1.msra.mxu0 0.0
    %1418 = vmatprep.subr.mxu0 0.0
    %1419 = vmatpush1.msra.mxu0 0.0
    %1420 = vmatprep.subr.mxu0 0.0
    %1421 = vmatpush1.msra.mxu0 0.0
    %1422 = vmatprep.subr.mxu0 0.0
    %1423 = vmatpush1.msra.mxu0 0.0
    %1424 = vmatprep.subr.mxu0 0.0
    %1425 = vmatpush1.msra.mxu0 0.0
    %1426 = vmatprep.subr.mxu0 0.0
    %1427 = vmatpush1.msra.mxu0 0.0
    %1428 = vmatprep.subr.mxu0 0.0
    %1429 = vmatpush1.msra.mxu0 0.0
    %1430 = vmatprep.subr.mxu0 0.0
    %1431 = vmatpush1.msra.mxu0 0.0
    %1432 = vmatprep.subr.mxu0 0.0
    %1433 = vmatpush1.msra.mxu0 0.0
    %1434 = vmatprep.subr.mxu0 0.0
    %1435 = vmatpush1.msra.mxu0 0.0
    %1436 = vmatprep.subr.mxu0 0.0
    %1437 = vmatpush1.msra.mxu0 0.0
    %1438 = vmatprep.subr.mxu0 0.0
    %1439 = vmatpush1.msra.mxu0 0.0
    %1440 = vmatprep.mubr.f32.mxu0 0.0
    %1441 = vmatmul.mubr.f32.gmra.mrb[0].mxu0 %v110
    %v1442 = vpop.f32.mrb[0].mxu0
    %v1443 = vadd.f32 0.0, %v1442
    %v1444 = vpop.f32.mrb[0].mxu0
    %v1445 = vadd.f32 0.0, %v1444
    %1446 = vmatprep.mubr.f32.mxu0 0.0
    %1447 = vmatmul.mubr.f32.gmra.mrb[0].mxu0 %v113
    %v1448 = vpop.f32.mrb[0].mxu0
    %v1449 = vadd.f32 0.0, %v1448
    %v1450 = vpop.f32.mrb[0].mxu0
    %v1451 = vadd.f32 0.0, %v1450
    %1452 = vmatprep.mubr.f32.mxu0 0.0
    %1453 = vmatmul.mubr.f32.gmra.mrb[0].mxu0 %v116
    %v1454 = vpop.f32.mrb[0].mxu0
    %v1455 = vadd.f32 0.0, %v1454
    %v1456 = vpop.f32.mrb[0].mxu0
    %v1457 = vadd.f32 0.0, %v1456
    %1458 = vmatprep.mubr.f32.mxu0 0.0
    %1459 = vmatmul.mubr.f32.gmra.mrb[0].mxu0 %v119
    %v1460 = vpop.f32.mrb[0].mxu0
    %v1461 = vadd.f32 0.0, %v1460
    %v1462 = vpop.f32.mrb[0].mxu0
    %v1463 = vadd.f32 0.0, %v1462
    %1464 = vmatprep.mubr.f32.mxu0 0.0
    %1465 = vmatmul.mubr.f32.gmra.mrb[0].mxu0 %v122
    %v1466 = vpop.f32.mrb[0].mxu0
    %v1467 = vadd.f32 0.0, %v1466
    %v1468 = vpop.f32.mrb[0].mxu0
    %v1469 = vadd.f32 0.0, %v1468
    %1470 = vmatprep.mubr.f32.mxu0 0.0
    %1471 = vmatmul.mubr.f32.gmra.mrb[0].mxu0 %v125
    %v1472 = vpop.f32.mrb[0].mxu0
    %v1473 = vadd.f32 0.0, %v1472
    %v1474 = vpop.f32.mrb[0].mxu0
    %v1475 = vadd.f32 0.0, %v1474
    %1476 = vmatprep.mubr.f32.mxu0 0.0
    %1477 = vmatmul.mubr.f32.gmra.mrb[0].mxu0 %v128
    %v1478 = vpop.f32.mrb[0].mxu0
    %v1479 = vadd.f32 0.0, %v1478
    %v1480 = vpop.f32.mrb[0].mxu0
    %v1481 = vadd.f32 0.0, %v1480
    %1482 = vmatprep.mubr.f32.mxu0 0.0
    %1483 = vmatmul.mubr.f32.gmra.mrb[0].mxu0 %v131
    %v1484 = vpop.f32.mrb[0].mxu0
    %v1485 = vadd.f32 0.0, %v1484
    %v1486 = vpop.f32.mrb[0].mxu0
    %v1487 = vadd.f32 0.0, %v1486
    %1488 = vdwg.mxu0
    %1489 = vmatprep.subr.mxu0 0.0
    %1490 = vmatpush1.msra.mxu0 %v57
    %1491 = vmatprep.subr.mxu0 0.0
    %1492 = vmatpush1.msra.mxu0 %v82
    %1493 = vmatprep.subr.mxu0 0.0
    %1494 = vmatpush1.msra.mxu0 %v107
    %1495 = vmatprep.subr.mxu0 0.0
    %1496 = vmatpush1.msra.mxu0 0.0
    %1497 = vmatprep.subr.mxu0 0.0
    %1498 = vmatpush1.msra.mxu0 0.0
    %1499 = vmatprep.subr.mxu0 0.0
    %1500 = vmatpush1.msra.mxu0 0.0
    %1501 = vmatprep.subr.mxu0 0.0
    %1502 = vmatpush1.msra.mxu0 0.0
    %1503 = vmatprep.subr.mxu0 0.0
    %1504 = vmatpush1.msra.mxu0 0.0
    %1505 = vmatprep.subr.mxu0 0.0
    %1506 = vmatpush1.msra.mxu0 0.0
    %1507 = vmatprep.subr.mxu0 0.0
    %1508 = vmatpush1.msra.mxu0 0.0
    %1509 = vmatprep.subr.mxu0 0.0
    %1510 = vmatpush1.msra.mxu0 0.0
    %1511 = vmatprep.subr.mxu0 0.0
    %1512 = vmatpush1.msra.mxu0 0.0
    %1513 = vmatprep.subr.mxu0 0.0
    %1514 = vmatpush1.msra.mxu0 0.0
    %1515 = vmatprep.subr.mxu0 0.0
    %1516 = vmatpush1.msra.mxu0 0.0
    %1517 = vmatprep.subr.mxu0 0.0
    %1518 = vmatpush1.msra.mxu0 0.0
    %1519 = vmatprep.subr.mxu0 0.0
    %1520 = vmatpush1.msra.mxu0 0.0
    %1521 = vmatprep.subr.mxu0 0.0
    %1522 = vmatpush1.msra.mxu0 0.0
    %1523 = vmatprep.subr.mxu0 0.0
    %1524 = vmatpush1.msra.mxu0 0.0
    %1525 = vmatprep.subr.mxu0 0.0
    %1526 = vmatpush1.msra.mxu0 0.0
    %1527 = vmatprep.subr.mxu0 0.0
    %1528 = vmatpush1.msra.mxu0 0.0
    %1529 = vmatprep.subr.mxu0 0.0
    %1530 = vmatpush1.msra.mxu0 0.0
    %1531 = vmatprep.subr.mxu0 0.0
    %1532 = vmatpush1.msra.mxu0 0.0
    %1533 = vmatprep.subr.mxu0 0.0
    %1534 = vmatpush1.msra.mxu0 0.0
    %1535 = vmatprep.subr.mxu0 0.0
    %1536 = vmatpush1.msra.mxu0 0.0
    %1537 = vmatprep.subr.mxu0 0.0
    %1538 = vmatpush1.msra.mxu0 0.0
    %1539 = vmatprep.subr.mxu0 0.0
    %1540 = vmatpush1.msra.mxu0 0.0
    %1541 = vmatprep.subr.mxu0 0.0
    %1542 = vmatpush1.msra.mxu0 0.0
    %1543 = vmatprep.subr.mxu0 0.0
    %1544 = vmatpush1.msra.mxu0 0.0
    %1545 = vmatprep.subr.mxu0 0.0
    %1546 = vmatpush1.msra.mxu0 0.0
    %1547 = vmatprep.subr.mxu0 0.0
    %1548 = vmatpush1.msra.mxu0 0.0
    %1549 = vmatprep.subr.mxu0 0.0
    %1550 = vmatpush1.msra.mxu0 0.0
    %1551 = vmatprep.subr.mxu0 0.0
    %1552 = vmatpush1.msra.mxu0 0.0
    %1553 = vmatprep.mubr.f32.mxu0 0.0
    %1554 = vmatmul.mubr.f32.gmra.mrb[0].mxu0 %v110
    %v1555 = vpop.f32.mrb[0].mxu0
    %v1556 = vadd.f32 0.0, %v1555
    %v1557 = vpop.f32.mrb[0].mxu0
    %1558 = vmatprep.mubr.f32.mxu0 0.0
    %1559 = vmatmul.mubr.f32.gmra.mrb[0].mxu0 %v113
    %v1560 = vpop.f32.mrb[0].mxu0
    %v1561 = vadd.f32 0.0, %v1560
    %v1562 = vpop.f32.mrb[0].mxu0
    %1563 = vmatprep.mubr.f32.mxu0 0.0
    %1564 = vmatmul.mubr.f32.gmra.mrb[0].mxu0 %v116
    %v1565 = vpop.f32.mrb[0].mxu0
    %v1566 = vadd.f32 0.0, %v1565
    %v1567 = vpop.f32.mrb[0].mxu0
    %1568 = vmatprep.mubr.f32.mxu0 0.0
    %1569 = vmatmul.mubr.f32.gmra.mrb[0].mxu0 %v119
    %v1570 = vpop.f32.mrb[0].mxu0
    %v1571 = vadd.f32 0.0, %v1570
    %v1572 = vpop.f32.mrb[0].mxu0
    %1573 = vmatprep.mubr.f32.mxu0 0.0
    %1574 = vmatmul.mubr.f32.gmra.mrb[0].mxu0 %v122
    %v1575 = vpop.f32.mrb[0].mxu0
    %v1576 = vadd.f32 0.0, %v1575
    %v1577 = vpop.f32.mrb[0].mxu0
    %1578 = vmatprep.mubr.f32.mxu0 0.0
    %1579 = vmatmul.mubr.f32.gmra.mrb[0].mxu0 %v125
    %v1580 = vpop.f32.mrb[0].mxu0
    %v1581 = vadd.f32 0.0, %v1580
    %v1582 = vpop.f32.mrb[0].mxu0
    %1583 = vmatprep.mubr.f32.mxu0 0.0
    %1584 = vmatmul.mubr.f32.gmra.mrb[0].mxu0 %v128
    %v1585 = vpop.f32.mrb[0].mxu0
    %v1586 = vadd.f32 0.0, %v1585
    %v1587 = vpop.f32.mrb[0].mxu0
    %1588 = vmatprep.mubr.f32.mxu0 0.0
    %1589 = vmatmul.mubr.f32.gmra.mrb[0].mxu0 %v131
    %v1590 = vpop.f32.mrb[0].mxu0
    %v1591 = vadd.f32 0.0, %v1590
    %v1592 = vpop.f32.mrb[0].mxu0
    %1593 = vdwg.mxu0
    %1594 = vst [vmem:[%s2] sm:$0xff] %v200
    %1595 = vst [vmem:[%s2 + $0x8] sm:$0xff] %v202
    %1596 = vst [vmem:[%s2 + $0x10] sm:$0xff] %v313
    %1597 = vst [vmem:[%s2 + $0x18] sm:$0xff] %v315
    %1598 = vst [vmem:[%s2 + $0x20] sm:$0xff] %v426
    %1599 = vst [vmem:[%s2 + $0x28] sm:$0xff] %v428
    %1600 = vst [vmem:[%s2 + $0x30] sm:$0xff] %v539
    %1601 = vst [vmem:[%s2 + $0x38] sm:$0xff] %v541
    %1602 = vst [vmem:[%s2 + $0x40] sm:$0xff] %v652
    %1603 = vst [vmem:[%s2 + $0x48] sm:$0xff] %v654
    %1604 = vst [vmem:[%s2 + $0x50] sm:$0xff] %v765
    %1605 = vst [vmem:[%s2 + $0x58] sm:$0xff] %v767
    %1606 = vst [vmem:[%s2 + $0x60] sm:$0xff] %v878
    %1607 = vst [vmem:[%s2 + $0x68] sm:$0xff] %v880
    %1608 = vst [vmem:[%s2 + $0x70] sm:$0xff] %v991
    %1609 = vst [vmem:[%s2 + $0x78] sm:$0xff] %v993
    %1610 = vst [vmem:[%s2 + $0x80] sm:$0xff] %v1104
    %1611 = vst [vmem:[%s2 + $0x88] sm:$0xff] %v1106
    %1612 = vst [vmem:[%s2 + $0x90] sm:$0xff] %v1217
    %1613 = vst [vmem:[%s2 + $0x98] sm:$0xff] %v1219
    %1614 = vst [vmem:[%s2 + $0xa0] sm:$0xff] %v1330
    %1615 = vst [vmem:[%s2 + $0xa8] sm:$0xff] %v1332
    %1616 = vst [vmem:[%s2 + $0xb0] sm:$0xff] %v1443
    %1617 = vst [vmem:[%s2 + $0xb8] sm:$0xff] %v1445
    %vm1618 = vcmask 523264
    %1619 = vst.msk [vmem:[%s2 + $0xc0] sm:$0xff] %vm1618, %v1556
    %1620 = vst [vmem:[%s2 + $0xc8] sm:$0xff] %v206
    %1621 = vst [vmem:[%s2 + $0xd0] sm:$0xff] %v208
    %1622 = vst [vmem:[%s2 + $0xd8] sm:$0xff] %v319
    %1623 = vst [vmem:[%s2 + $0xe0] sm:$0xff] %v321
    %1624 = vst [vmem:[%s2 + $0xe8] sm:$0xff] %v432
    %1625 = vst [vmem:[%s2 + $0xf0] sm:$0xff] %v434
    %1626 = vst [vmem:[%s2 + $0xf8] sm:$0xff] %v545
    %1627 = vst [vmem:[%s2 + $0x100] sm:$0xff] %v547
    %1628 = vst [vmem:[%s2 + $0x108] sm:$0xff] %v658
    %1629 = vst [vmem:[%s2 + $0x110] sm:$0xff] %v660
    %1630 = vst [vmem:[%s2 + $0x118] sm:$0xff] %v771
    %1631 = vst [vmem:[%s2 + $0x120] sm:$0xff] %v773
    %1632 = vst [vmem:[%s2 + $0x128] sm:$0xff] %v884
    %1633 = vst [vmem:[%s2 + $0x130] sm:$0xff] %v886
    %1634 = vst [vmem:[%s2 + $0x138] sm:$0xff] %v997
    %1635 = vst [vmem:[%s2 + $0x140] sm:$0xff] %v999
    %1636 = vst [vmem:[%s2 + $0x148] sm:$0xff] %v1110
    %1637 = vst [vmem:[%s2 + $0x150] sm:$0xff] %v1112
    %1638 = vst [vmem:[%s2 + $0x158] sm:$0xff] %v1223
    %1639 = vst [vmem:[%s2 + $0x160] sm:$0xff] %v1225
    %1640 = vst [vmem:[%s2 + $0x168] sm:$0xff] %v1336
    %1641 = vst [vmem:[%s2 + $0x170] sm:$0xff] %v1338
    %1642 = vst [vmem:[%s2 + $0x178] sm:$0xff] %v1449
    %1643 = vst [vmem:[%s2 + $0x180] sm:$0xff] %v1451
    %1644 = vst.msk [vmem:[%s2 + $0x188] sm:$0xff] %vm1618, %v1561
    %1645 = vst [vmem:[%s2 + $0x190] sm:$0xff] %v212
    %1646 = vst [vmem:[%s2 + $0x198] sm:$0xff] %v214
    %1647 = vst [vmem:[%s2 + $0x1a0] sm:$0xff] %v325
    %1648 = vst [vmem:[%s2 + $0x1a8] sm:$0xff] %v327
    %1649 = vst [vmem:[%s2 + $0x1b0] sm:$0xff] %v438
    %1650 = vst [vmem:[%s2 + $0x1b8] sm:$0xff] %v440
    %1651 = vst [vmem:[%s2 + $0x1c0] sm:$0xff] %v551
    %1652 = vst [vmem:[%s2 + $0x1c8] sm:$0xff] %v553
    %1653 = vst [vmem:[%s2 + $0x1d0] sm:$0xff] %v664
    %1654 = vst [vmem:[%s2 + $0x1d8] sm:$0xff] %v666
    %1655 = vst [vmem:[%s2 + $0x1e0] sm:$0xff] %v777
    %1656 = vst [vmem:[%s2 + $0x1e8] sm:$0xff] %v779
    %1657 = vst [vmem:[%s2 + $0x1f0] sm:$0xff] %v890
    %1658 = vst [vmem:[%s2 + $0x1f8] sm:$0xff] %v892
    %1659 = vst [vmem:[%s2 + $0x200] sm:$0xff] %v1003
    %1660 = vst [vmem:[%s2 + $0x208] sm:$0xff] %v1005
    %1661 = vst [vmem:[%s2 + $0x210] sm:$0xff] %v1116
    %1662 = vst [vmem:[%s2 + $0x218] sm:$0xff] %v1118
    %1663 = vst [vmem:[%s2 + $0x220] sm:$0xff] %v1229
    %1664 = vst [vmem:[%s2 + $0x228] sm:$0xff] %v1231
    %1665 = vst [vmem:[%s2 + $0x230] sm:$0xff] %v1342
    %1666 = vst [vmem:[%s2 + $0x238] sm:$0xff] %v1344
    %1667 = vst [vmem:[%s2 + $0x240] sm:$0xff] %v1455
    %1668 = vst [vmem:[%s2 + $0x248] sm:$0xff] %v1457
    %1669 = vst.msk [vmem:[%s2 + $0x250] sm:$0xff] %vm1618, %v1566
    %1670 = vst [vmem:[%s2 + $0x258] sm:$0xff] %v218
    %1671 = vst [vmem:[%s2 + $0x260] sm:$0xff] %v220
    %1672 = vst [vmem:[%s2 + $0x268] sm:$0xff] %v331
    %1673 = vst [vmem:[%s2 + $0x270] sm:$0xff] %v333
    %1674 = vst [vmem:[%s2 + $0x278] sm:$0xff] %v444
    %1675 = vst [vmem:[%s2 + $0x280] sm:$0xff] %v446
    %1676 = vst [vmem:[%s2 + $0x288] sm:$0xff] %v557
    %1677 = vst [vmem:[%s2 + $0x290] sm:$0xff] %v559
    %1678 = vst [vmem:[%s2 + $0x298] sm:$0xff] %v670
    %1679 = vst [vmem:[%s2 + $0x2a0] sm:$0xff] %v672
    %1680 = vst [vmem:[%s2 + $0x2a8] sm:$0xff] %v783
    %1681 = vst [vmem:[%s2 + $0x2b0] sm:$0xff] %v785
    %1682 = vst [vmem:[%s2 + $0x2b8] sm:$0xff] %v896
    %1683 = vst [vmem:[%s2 + $0x2c0] sm:$0xff] %v898
    %1684 = vst [vmem:[%s2 + $0x2c8] sm:$0xff] %v1009
    %1685 = vst [vmem:[%s2 + $0x2d0] sm:$0xff] %v1011
    %1686 = vst [vmem:[%s2 + $0x2d8] sm:$0xff] %v1122
    %1687 = vst [vmem:[%s2 + $0x2e0] sm:$0xff] %v1124
    %1688 = vst [vmem:[%s2 + $0x2e8] sm:$0xff] %v1235
    %1689 = vst [vmem:[%s2 + $0x2f0] sm:$0xff] %v1237
    %1690 = vst [vmem:[%s2 + $0x2f8] sm:$0xff] %v1348
    %1691 = vst [vmem:[%s2 + $0x300] sm:$0xff] %v1350
    %1692 = vst [vmem:[%s2 + $0x308] sm:$0xff] %v1461
    %1693 = vst [vmem:[%s2 + $0x310] sm:$0xff] %v1463
    %1694 = vst.msk [vmem:[%s2 + $0x318] sm:$0xff] %vm1618, %v1571
    %1695 = vst [vmem:[%s2 + $0x320] sm:$0xff] %v224
    %1696 = vst [vmem:[%s2 + $0x328] sm:$0xff] %v226
    %1697 = vst [vmem:[%s2 + $0x330] sm:$0xff] %v337
    %1698 = vst [vmem:[%s2 + $0x338] sm:$0xff] %v339
    %1699 = vst [vmem:[%s2 + $0x340] sm:$0xff] %v450
    %1700 = vst [vmem:[%s2 + $0x348] sm:$0xff] %v452
    %1701 = vst [vmem:[%s2 + $0x350] sm:$0xff] %v563
    %1702 = vst [vmem:[%s2 + $0x358] sm:$0xff] %v565
    %1703 = vst [vmem:[%s2 + $0x360] sm:$0xff] %v676
    %1704 = vst [vmem:[%s2 + $0x368] sm:$0xff] %v678
    %1705 = vst [vmem:[%s2 + $0x370] sm:$0xff] %v789
    %1706 = vst [vmem:[%s2 + $0x378] sm:$0xff] %v791
    %1707 = vst [vmem:[%s2 + $0x380] sm:$0xff] %v902
    %1708 = vst [vmem:[%s2 + $0x388] sm:$0xff] %v904
    %1709 = vst [vmem:[%s2 + $0x390] sm:$0xff] %v1015
    %1710 = vst [vmem:[%s2 + $0x398] sm:$0xff] %v1017
    %1711 = vst [vmem:[%s2 + $0x3a0] sm:$0xff] %v1128
    %1712 = vst [vmem:[%s2 + $0x3a8] sm:$0xff] %v1130
    %1713 = vst [vmem:[%s2 + $0x3b0] sm:$0xff] %v1241
    %1714 = vst [vmem:[%s2 + $0x3b8] sm:$0xff] %v1243
    %1715 = vst [vmem:[%s2 + $0x3c0] sm:$0xff] %v1354
    %1716 = vst [vmem:[%s2 + $0x3c8] sm:$0xff] %v1356
    %1717 = vst [vmem:[%s2 + $0x3d0] sm:$0xff] %v1467
    %1718 = vst [vmem:[%s2 + $0x3d8] sm:$0xff] %v1469
    %1719 = vst.msk [vmem:[%s2 + $0x3e0] sm:$0xff] %vm1618, %v1576
    %1720 = vst [vmem:[%s2 + $0x3e8] sm:$0xff] %v230
    %1721 = vst [vmem:[%s2 + $0x3f0] sm:$0xff] %v232
    %1722 = vst [vmem:[%s2 + $0x3f8] sm:$0xff] %v343
    %1723 = vst [vmem:[%s2 + $0x400] sm:$0xff] %v345
    %1724 = vst [vmem:[%s2 + $0x408] sm:$0xff] %v456
    %1725 = vst [vmem:[%s2 + $0x410] sm:$0xff] %v458
    %1726 = vst [vmem:[%s2 + $0x418] sm:$0xff] %v569
    %1727 = vst [vmem:[%s2 + $0x420] sm:$0xff] %v571
    %1728 = vst [vmem:[%s2 + $0x428] sm:$0xff] %v682
    %1729 = vst [vmem:[%s2 + $0x430] sm:$0xff] %v684
    %1730 = vst [vmem:[%s2 + $0x438] sm:$0xff] %v795
    %1731 = vst [vmem:[%s2 + $0x440] sm:$0xff] %v797
    %1732 = vst [vmem:[%s2 + $0x448] sm:$0xff] %v908
    %1733 = vst [vmem:[%s2 + $0x450] sm:$0xff] %v910
    %1734 = vst [vmem:[%s2 + $0x458] sm:$0xff] %v1021
    %1735 = vst [vmem:[%s2 + $0x460] sm:$0xff] %v1023
    %1736 = vst [vmem:[%s2 + $0x468] sm:$0xff] %v1134
    %1737 = vst [vmem:[%s2 + $0x470] sm:$0xff] %v1136
    %1738 = vst [vmem:[%s2 + $0x478] sm:$0xff] %v1247
    %1739 = vst [vmem:[%s2 + $0x480] sm:$0xff] %v1249
    %1740 = vst [vmem:[%s2 + $0x488] sm:$0xff] %v1360
    %1741 = vst [vmem:[%s2 + $0x490] sm:$0xff] %v1362
    %1742 = vst [vmem:[%s2 + $0x498] sm:$0xff] %v1473
    %1743 = vst [vmem:[%s2 + $0x4a0] sm:$0xff] %v1475
    %1744 = vst.msk [vmem:[%s2 + $0x4a8] sm:$0xff] %vm1618, %v1581
    %1745 = vst [vmem:[%s2 + $0x4b0] sm:$0xff] %v236
    %1746 = vst [vmem:[%s2 + $0x4b8] sm:$0xff] %v238
    %1747 = vst [vmem:[%s2 + $0x4c0] sm:$0xff] %v349
    %1748 = vst [vmem:[%s2 + $0x4c8] sm:$0xff] %v351
    %1749 = vst [vmem:[%s2 + $0x4d0] sm:$0xff] %v462
    %1750 = vst [vmem:[%s2 + $0x4d8] sm:$0xff] %v464
    %1751 = vst [vmem:[%s2 + $0x4e0] sm:$0xff] %v575
    %1752 = vst [vmem:[%s2 + $0x4e8] sm:$0xff] %v577
    %1753 = vst [vmem:[%s2 + $0x4f0] sm:$0xff] %v688
    %1754 = vst [vmem:[%s2 + $0x4f8] sm:$0xff] %v690
    %1755 = vst [vmem:[%s2 + $0x500] sm:$0xff] %v801
    %1756 = vst [vmem:[%s2 + $0x508] sm:$0xff] %v803
    %1757 = vst [vmem:[%s2 + $0x510] sm:$0xff] %v914
    %1758 = vst [vmem:[%s2 + $0x518] sm:$0xff] %v916
    %1759 = vst [vmem:[%s2 + $0x520] sm:$0xff] %v1027
    %1760 = vst [vmem:[%s2 + $0x528] sm:$0xff] %v1029
    %1761 = vst [vmem:[%s2 + $0x530] sm:$0xff] %v1140
    %1762 = vst [vmem:[%s2 + $0x538] sm:$0xff] %v1142
    %1763 = vst [vmem:[%s2 + $0x540] sm:$0xff] %v1253
    %1764 = vst [vmem:[%s2 + $0x548] sm:$0xff] %v1255
    %1765 = vst [vmem:[%s2 + $0x550] sm:$0xff] %v1366
    %1766 = vst [vmem:[%s2 + $0x558] sm:$0xff] %v1368
    %1767 = vst [vmem:[%s2 + $0x560] sm:$0xff] %v1479
    %1768 = vst [vmem:[%s2 + $0x568] sm:$0xff] %v1481
    %1769 = vst.msk [vmem:[%s2 + $0x570] sm:$0xff] %vm1618, %v1586
    %1770 = vst [vmem:[%s2 + $0x578] sm:$0x3] %v242
    %1771 = vst [vmem:[%s2 + $0x580] sm:$0x3] %v244
    %1772 = vst [vmem:[%s2 + $0x588] sm:$0x3] %v355
    %1773 = vst [vmem:[%s2 + $0x590] sm:$0x3] %v357
    %1774 = vst [vmem:[%s2 + $0x598] sm:$0x3] %v468
    %1775 = vst [vmem:[%s2 + $0x5a0] sm:$0x3] %v470
    %1776 = vst [vmem:[%s2 + $0x5a8] sm:$0x3] %v581
    %1777 = vst [vmem:[%s2 + $0x5b0] sm:$0x3] %v583
    %1778 = vst [vmem:[%s2 + $0x5b8] sm:$0x3] %v694
    %1779 = vst [vmem:[%s2 + $0x5c0] sm:$0x3] %v696
    %1780 = vst [vmem:[%s2 + $0x5c8] sm:$0x3] %v807
    %1781 = vst [vmem:[%s2 + $0x5d0] sm:$0x3] %v809
    %1782 = vst [vmem:[%s2 + $0x5d8] sm:$0x3] %v920
    %1783 = vst [vmem:[%s2 + $0x5e0] sm:$0x3] %v922
    %1784 = vst [vmem:[%s2 + $0x5e8] sm:$0x3] %v1033
    %1785 = vst [vmem:[%s2 + $0x5f0] sm:$0x3] %v1035
    %1786 = vst [vmem:[%s2 + $0x5f8] sm:$0x3] %v1146
    %1787 = vst [vmem:[%s2 + $0x600] sm:$0x3] %v1148
    %1788 = vst [vmem:[%s2 + $0x608] sm:$0x3] %v1259
    %1789 = vst [vmem:[%s2 + $0x610] sm:$0x3] %v1261
    %1790 = vst [vmem:[%s2 + $0x618] sm:$0x3] %v1372
    %1791 = vst [vmem:[%s2 + $0x620] sm:$0x3] %v1374
    %1792 = vst [vmem:[%s2 + $0x628] sm:$0x3] %v1485
    %1793 = vst [vmem:[%s2 + $0x630] sm:$0x3] %v1487
    %vm1794 = vcmask 517120
    %1795 = vst.msk [vmem:[%s2 + $0x638] sm:$0x3] %vm1794, %v1591
    // Predicated region
    $region14: #{tpu_custom_call.1} parent=1 // pred_check
      _
    $region15: #{tpu_custom_call.1} parent=1 // pred_check_branch
      %1797 = sbr.rel (0) target = $region17
    $region16: #{tpu_custom_call.1} parent=1 // pred_region
      _
    $region17: #{tpu_custom_call.1} parent=1 // pred_fallthru
      _
    // Predicated region
    $region18: #{tpu_custom_call.1} parent=1 // pred_check
      _
    $region19: #{tpu_custom_call.1} parent=1 // pred_check_branch
      %1799 = sbr.rel (0) target = $region21
    $region20: #{tpu_custom_call.1} parent=1 // pred_region
      _
    $region21: #{tpu_custom_call.1} parent=1 // pred_fallthru
      _
    %1800 = vsyncpa [#allocation3], 1

</llo_original>
